<compile_context>
chip_gen: v7x
topology: tpu7x:2x2x1
jax: 0.10.0
libtpu: 0.0.40
codegen_flags: <defaults>
</compile_context>

<pallas_src>
import math
import functools

import jax
import jax.numpy as jnp
from jax import lax
from jax.experimental import pallas as pl
from jax.experimental.pallas import tpu as pltpu


def attention_kernel(x_ref, wqkv_ref, bqkv_ref, wo_ref, bo_ref, out_ref,
                     *, batch, seq, num_heads, head_dim):
    H = num_heads * head_dim
    scale = 1.0 / math.sqrt(head_dim)

    x = x_ref[...]                                           # (B*S, H)

    # Fused QKV projection: one MXU push/pop instead of three.
    qkv = jnp.dot(x, wqkv_ref[...], preferred_element_type=jnp.float32) + bqkv_ref[0]

    # Static, fully-unrolled loops over batch & heads.  Each head's q/k/v window is sliced
    # directly out of qkv (no full q/k/v copies), and the per-head contexts stay in registers:
    # concatenated along lanes per batch, then batches stacked along rows.
    batch_ctx = []
    for b in range(batch):
        r0 = b * seq
        head_ctx = []
        for h in range(num_heads):
            c0 = h * head_dim
            # Fold the softmax scale into q (S*hd elements per head instead of S*S scores).
            qh = qkv[r0:r0 + seq, c0:c0 + head_dim] * scale              # (S, hd)
            kh = qkv[r0:r0 + seq, H + c0:H + c0 + head_dim]              # (S, hd)
            vh = qkv[r0:r0 + seq, 2 * H + c0:2 * H + c0 + head_dim]      # (S, hd)

            # scores = qh @ kh.T  (contract on head_dim, no explicit transpose materialized)
            s = lax.dot_general(qh, kh, (((1,), (1,)), ((), ())),
                                preferred_element_type=jnp.float32)      # (S, S)

            # Numerically-stable softmax; reciprocal goes to the EUP slot.
            m = jnp.max(s, axis=-1, keepdims=True)
            e = jnp.exp(s - m)
            denom = jnp.sum(e, axis=-1, keepdims=True)
            p = e * pl.reciprocal(denom, approx=True)

            head_ctx.append(jnp.dot(p, vh, preferred_element_type=jnp.float32))  # (S, hd)

        batch_ctx.append(jnp.concatenate(head_ctx, axis=1))             # (S, H)

    ctx = jnp.concatenate(batch_ctx, axis=0)                            # (B*S, H), in vregs

    # Output projection on the merged (B*S, H) context — fed straight from registers.
    out = jnp.dot(ctx, wo_ref[...], preferred_element_type=jnp.float32) + bo_ref[0]
    out_ref[...] = out.astype(out_ref.dtype)


def fuse_attention_params(params):
    """One-time parameter prep: fuse Q/K/V weights & biases (do NOT call per-forward)."""
    wq, bq, wk, bk, wv, bv, wo, bo = params
    wqkv = jnp.concatenate([wq, wk, wv], axis=1)             # (H, 3H)
    bqkv = jnp.concatenate([bq, bk, bv], axis=1)             # (1, 3H)
    return wqkv, bqkv, wo, bo


def attention_forward(hidden_states, fused_params, *, num_heads):
    """hidden_states: [B, S, H] float32; fused_params from fuse_attention_params()."""
    B, S, H = hidden_states.shape
    head_dim = H // num_heads
    wqkv, bqkv, wo, bo = fused_params

    x2d = hidden_states.reshape(B * S, H)
    BS = B * S

    kernel = functools.partial(attention_kernel, batch=B, seq=S,
                               num_heads=num_heads, head_dim=head_dim)

    flops = (2 * BS * H * 3 * H                               # fused QKV projection
             + 2 * 2 * B * num_heads * S * S * head_dim       # QK^T + PV
             + 2 * BS * H * H)                                # output projection
    transcendentals = B * num_heads * S * S                   # exp
    bytes_accessed = 4 * (BS * H                              # x in
                          + H * 3 * H + 3 * H                 # fused qkv weight + bias
                          + H * H + H                         # out weight + bias
                          + BS * H)                           # output

    vmem = pl.BlockSpec(memory_space=pltpu.MemorySpace.VMEM)

    # Grid-less pallas_call: whole working set lives in VMEM, no pipeline prologue/epilogue,
    # no per-operand double buffers.
    out2d = pl.pallas_call(
        kernel,
        out_shape=jax.ShapeDtypeStruct((BS, H), hidden_states.dtype),
        in_specs=[vmem, vmem, vmem, vmem, vmem],              # x, wqkv, bqkv, wo, bo
        out_specs=vmem,
        cost_estimate=pl.CostEstimate(flops=flops,
                                      transcendentals=transcendentals,
                                      bytes_accessed=bytes_accessed),
    )(x2d, wqkv, bqkv, wo, bo)

    return out2d.reshape(B, S, H)


def attention_reference(hidden_states, params, *, num_heads):
    """Pure-JAX reference mirroring the PyTorch forward (eval mode)."""
    B, S, H = hidden_states.shape
    hd = H // num_heads
    wq, bq, wk, bk, wv, bv, wo, bo = params
    x = hidden_states
    q = x @ wq + bq[0]
    k = x @ wk + bk[0]
    v = x @ wv + bv[0]

    def split(t):
        return t.reshape(B, S, num_heads, hd).transpose(0, 2, 1, 3)

    qh, kh, vh = split(q), split(k), split(v)
    scores = jnp.einsum('bhqd,bhkd->bhqk', qh, kh) / math.sqrt(hd)
    probs = jax.nn.softmax(scores, axis=-1)
    ctx = jnp.einsum('bhqk,bhkd->bhqd', probs, vh)
    ctx = ctx.transpose(0, 2, 1, 3).reshape(B, S, H)
    return ctx @ wo + bo[0]


if __name__ == "__main__":
    # config: hidden_size=32, num_heads=4 -> head_dim=8
    B, S, H = 2, 8, 32
    num_heads = 4

    key = jax.random.PRNGKey(0)
    keys = jax.random.split(key, 9)
    hidden_states = jax.random.normal(keys[0], (B, S, H), dtype=jnp.float32)

    def init_linear(kw, kb):
        bound = 1.0 / math.sqrt(H)
        w = jax.random.uniform(kw, (H, H), jnp.float32, -bound, bound)
        b = jax.random.uniform(kb, (1, H), jnp.float32, -bound, bound)
        return w, b

    wq, bq = init_linear(keys[1], keys[2])
    wk, bk = init_linear(keys[3], keys[4])
    wv, bv = init_linear(keys[5], keys[6])
    wo, bo = init_linear(keys[7], keys[8])
    params = (wq, bq, wk, bk, wv, bv, wo, bo)

    # One-time parameter fusion (hoisted out of the forward path).
    fused_params = fuse_attention_params(params)
    fused_params = jax.block_until_ready(fused_params)

    out = attention_forward(hidden_states, fused_params, num_heads=num_heads)
    out = jax.block_until_ready(out)

    ref = attention_reference(hidden_states, params, num_heads=num_heads)
    assert out.shape == (B, S, H)
    # Tolerance loosened slightly for pl.reciprocal(approx=True) (~2^-12 rel error).
    assert jnp.allclose(out, ref, atol=2e-3, rtol=2e-3), "mismatch vs JAX reference"

    print("KERNEL_OK")
</pallas_src>

<mosaic_0001>
module attributes {stable_mosaic.version = 11 : i64} {
  func.func @attention_kernel(%arg0: memref<16x32xf32, #tpu.memory_space<vmem>>, %arg1: memref<32x96xf32, #tpu.memory_space<vmem>>, %arg2: memref<1x96xf32, #tpu.memory_space<vmem>>, %arg3: memref<32x32xf32, #tpu.memory_space<vmem>>, %arg4: memref<1x32xf32, #tpu.memory_space<vmem>>, %arg5: memref<16x32xf32, #tpu.memory_space<vmem>>) attributes {dimension_semantics = [], scalar_prefetch = 0 : i64, scratch_operands = 0 : i64, tpu.core_type = #tpu.core_type<tc>} {
    %c0 = arith.constant 0 : index
    %c0_0 = arith.constant 0 : index
    %0 = vector.load %arg0[%c0, %c0_0] : memref<16x32xf32, #tpu.memory_space<vmem>>, vector<16x32xf32>
    %c0_1 = arith.constant 0 : index
    %c0_2 = arith.constant 0 : index
    %1 = vector.load %arg1[%c0_1, %c0_2] : memref<32x96xf32, #tpu.memory_space<vmem>>, vector<32x96xf32>
    %cst = arith.constant dense<0.000000e+00> : vector<16x96xf32>
    %2 = tpu.matmul %0, %1, %cst {dimension_numbers = #tpu.dot_dimension_numbers<[1], [0], [0], [1], [0, 0, 1, 1], [], []>} : vector<16x32xf32>, vector<32x96xf32>, vector<16x96xf32> -> vector<16x96xf32>
    %c0_3 = arith.constant 0 : index
    %c0_4 = arith.constant 0 : index
    %3 = vector.load %arg2[%c0_3, %c0_4] : memref<1x96xf32, #tpu.memory_space<vmem>>, vector<1x96xf32>
    %4 = vector.shape_cast %3 : vector<1x96xf32> to vector<96xf32>
    %5 = vector.shape_cast %4 : vector<96xf32> to vector<1x96xf32>
    %6 = vector.broadcast %5 : vector<1x96xf32> to vector<16x96xf32>
    %7 = arith.addf %2, %6 : vector<16x96xf32>
    %8 = vector.extract_strided_slice %7 {offsets = [0, 0], sizes = [8, 8], strides = [1, 1]} : vector<16x96xf32> to vector<8x8xf32>
    %cst_5 = arith.constant 0.353553385 : f32
    %9 = vector.broadcast %cst_5 : f32 to vector<8x8xf32>
    %10 = arith.mulf %8, %9 : vector<8x8xf32>
    %11 = vector.extract_strided_slice %7 {offsets = [0, 32], sizes = [8, 8], strides = [1, 1]} : vector<16x96xf32> to vector<8x8xf32>
    %12 = vector.extract_strided_slice %7 {offsets = [0, 64], sizes = [8, 8], strides = [1, 1]} : vector<16x96xf32> to vector<8x8xf32>
    %cst_6 = arith.constant dense<0.000000e+00> : vector<8x8xf32>
    %13 = tpu.matmul %10, %11, %cst_6 {dimension_numbers = #tpu.dot_dimension_numbers<[1], [1], [0], [0], [0, 0, 1, 0], [], []>} : vector<8x8xf32>, vector<8x8xf32>, vector<8x8xf32> -> vector<8x8xf32>
    %cst_7 = arith.constant dense<0xFF800000> : vector<8xf32>
    %14 = vector.multi_reduction <maximumf>, %13, %cst_7 [1] : vector<8x8xf32> to vector<8xf32>
    %15 = vector.shape_cast %14 : vector<8xf32> to vector<8x1xf32>
    %16 = vector.broadcast %15 : vector<8x1xf32> to vector<8x8xf32>
    %17 = arith.subf %13, %16 : vector<8x8xf32>
    %18 = math.exp %17 : vector<8x8xf32>
    %cst_8 = arith.constant dense<0.000000e+00> : vector<8xf32>
    %19 = vector.multi_reduction <add>, %18, %cst_8 [1] : vector<8x8xf32> to vector<8xf32>
    %20 = vector.shape_cast %19 : vector<8xf32> to vector<8x1xf32>
    %21 = tpu.reciprocal %20 {approx = true} : vector<8x1xf32> -> vector<8x1xf32>
    %22 = vector.broadcast %21 : vector<8x1xf32> to vector<8x8xf32>
    %23 = arith.mulf %18, %22 : vector<8x8xf32>
    %cst_9 = arith.constant dense<0.000000e+00> : vector<8x8xf32>
    %24 = tpu.matmul %23, %12, %cst_9 {dimension_numbers = #tpu.dot_dimension_numbers<[1], [0], [0], [1], [0, 0, 1, 1], [], []>} : vector<8x8xf32>, vector<8x8xf32>, vector<8x8xf32> -> vector<8x8xf32>
    %25 = vector.extract_strided_slice %7 {offsets = [0, 8], sizes = [8, 8], strides = [1, 1]} : vector<16x96xf32> to vector<8x8xf32>
    %cst_10 = arith.constant 0.353553385 : f32
    %26 = vector.broadcast %cst_10 : f32 to vector<8x8xf32>
    %27 = arith.mulf %25, %26 : vector<8x8xf32>
    %28 = vector.extract_strided_slice %7 {offsets = [0, 40], sizes = [8, 8], strides = [1, 1]} : vector<16x96xf32> to vector<8x8xf32>
    %29 = vector.extract_strided_slice %7 {offsets = [0, 72], sizes = [8, 8], strides = [1, 1]} : vector<16x96xf32> to vector<8x8xf32>
    %cst_11 = arith.constant dense<0.000000e+00> : vector<8x8xf32>
    %30 = tpu.matmul %27, %28, %cst_11 {dimension_numbers = #tpu.dot_dimension_numbers<[1], [1], [0], [0], [0, 0, 1, 0], [], []>} : vector<8x8xf32>, vector<8x8xf32>, vector<8x8xf32> -> vector<8x8xf32>
    %cst_12 = arith.constant dense<0xFF800000> : vector<8xf32>
    %31 = vector.multi_reduction <maximumf>, %30, %cst_12 [1] : vector<8x8xf32> to vector<8xf32>
    %32 = vector.shape_cast %31 : vector<8xf32> to vector<8x1xf32>
    %33 = vector.broadcast %32 : vector<8x1xf32> to vector<8x8xf32>
    %34 = arith.subf %30, %33 : vector<8x8xf32>
    %35 = math.exp %34 : vector<8x8xf32>
    %cst_13 = arith.constant dense<0.000000e+00> : vector<8xf32>
    %36 = vector.multi_reduction <add>, %35, %cst_13 [1] : vector<8x8xf32> to vector<8xf32>
    %37 = vector.shape_cast %36 : vector<8xf32> to vector<8x1xf32>
    %38 = tpu.reciprocal %37 {approx = true} : vector<8x1xf32> -> vector<8x1xf32>
    %39 = vector.broadcast %38 : vector<8x1xf32> to vector<8x8xf32>
    %40 = arith.mulf %35, %39 : vector<8x8xf32>
    %cst_14 = arith.constant dense<0.000000e+00> : vector<8x8xf32>
    %41 = tpu.matmul %40, %29, %cst_14 {dimension_numbers = #tpu.dot_dimension_numbers<[1], [0], [0], [1], [0, 0, 1, 1], [], []>} : vector<8x8xf32>, vector<8x8xf32>, vector<8x8xf32> -> vector<8x8xf32>
    %42 = vector.extract_strided_slice %7 {offsets = [0, 16], sizes = [8, 8], strides = [1, 1]} : vector<16x96xf32> to vector<8x8xf32>
    %cst_15 = arith.constant 0.353553385 : f32
    %43 = vector.broadcast %cst_15 : f32 to vector<8x8xf32>
    %44 = arith.mulf %42, %43 : vector<8x8xf32>
    %45 = vector.extract_strided_slice %7 {offsets = [0, 48], sizes = [8, 8], strides = [1, 1]} : vector<16x96xf32> to vector<8x8xf32>
    %46 = vector.extract_strided_slice %7 {offsets = [0, 80], sizes = [8, 8], strides = [1, 1]} : vector<16x96xf32> to vector<8x8xf32>
    %cst_16 = arith.constant dense<0.000000e+00> : vector<8x8xf32>
    %47 = tpu.matmul %44, %45, %cst_16 {dimension_numbers = #tpu.dot_dimension_numbers<[1], [1], [0], [0], [0, 0, 1, 0], [], []>} : vector<8x8xf32>, vector<8x8xf32>, vector<8x8xf32> -> vector<8x8xf32>
    %cst_17 = arith.constant dense<0xFF800000> : vector<8xf32>
    %48 = vector.multi_reduction <maximumf>, %47, %cst_17 [1] : vector<8x8xf32> to vector<8xf32>
    %49 = vector.shape_cast %48 : vector<8xf32> to vector<8x1xf32>
    %50 = vector.broadcast %49 : vector<8x1xf32> to vector<8x8xf32>
    %51 = arith.subf %47, %50 : vector<8x8xf32>
    %52 = math.exp %51 : vector<8x8xf32>
    %cst_18 = arith.constant dense<0.000000e+00> : vector<8xf32>
    %53 = vector.multi_reduction <add>, %52, %cst_18 [1] : vector<8x8xf32> to vector<8xf32>
    %54 = vector.shape_cast %53 : vector<8xf32> to vector<8x1xf32>
    %55 = tpu.reciprocal %54 {approx = true} : vector<8x1xf32> -> vector<8x1xf32>
    %56 = vector.broadcast %55 : vector<8x1xf32> to vector<8x8xf32>
    %57 = arith.mulf %52, %56 : vector<8x8xf32>
    %cst_19 = arith.constant dense<0.000000e+00> : vector<8x8xf32>
    %58 = tpu.matmul %57, %46, %cst_19 {dimension_numbers = #tpu.dot_dimension_numbers<[1], [0], [0], [1], [0, 0, 1, 1], [], []>} : vector<8x8xf32>, vector<8x8xf32>, vector<8x8xf32> -> vector<8x8xf32>
    %59 = vector.extract_strided_slice %7 {offsets = [0, 24], sizes = [8, 8], strides = [1, 1]} : vector<16x96xf32> to vector<8x8xf32>
    %cst_20 = arith.constant 0.353553385 : f32
    %60 = vector.broadcast %cst_20 : f32 to vector<8x8xf32>
    %61 = arith.mulf %59, %60 : vector<8x8xf32>
    %62 = vector.extract_strided_slice %7 {offsets = [0, 56], sizes = [8, 8], strides = [1, 1]} : vector<16x96xf32> to vector<8x8xf32>
    %63 = vector.extract_strided_slice %7 {offsets = [0, 88], sizes = [8, 8], strides = [1, 1]} : vector<16x96xf32> to vector<8x8xf32>
    %cst_21 = arith.constant dense<0.000000e+00> : vector<8x8xf32>
    %64 = tpu.matmul %61, %62, %cst_21 {dimension_numbers = #tpu.dot_dimension_numbers<[1], [1], [0], [0], [0, 0, 1, 0], [], []>} : vector<8x8xf32>, vector<8x8xf32>, vector<8x8xf32> -> vector<8x8xf32>
    %cst_22 = arith.constant dense<0xFF800000> : vector<8xf32>
    %65 = vector.multi_reduction <maximumf>, %64, %cst_22 [1] : vector<8x8xf32> to vector<8xf32>
    %66 = vector.shape_cast %65 : vector<8xf32> to vector<8x1xf32>
    %67 = vector.broadcast %66 : vector<8x1xf32> to vector<8x8xf32>
    %68 = arith.subf %64, %67 : vector<8x8xf32>
    %69 = math.exp %68 : vector<8x8xf32>
    %cst_23 = arith.constant dense<0.000000e+00> : vector<8xf32>
    %70 = vector.multi_reduction <add>, %69, %cst_23 [1] : vector<8x8xf32> to vector<8xf32>
    %71 = vector.shape_cast %70 : vector<8xf32> to vector<8x1xf32>
    %72 = tpu.reciprocal %71 {approx = true} : vector<8x1xf32> -> vector<8x1xf32>
    %73 = vector.broadcast %72 : vector<8x1xf32> to vector<8x8xf32>
    %74 = arith.mulf %69, %73 : vector<8x8xf32>
    %cst_24 = arith.constant dense<0.000000e+00> : vector<8x8xf32>
    %75 = tpu.matmul %74, %63, %cst_24 {dimension_numbers = #tpu.dot_dimension_numbers<[1], [0], [0], [1], [0, 0, 1, 1], [], []>} : vector<8x8xf32>, vector<8x8xf32>, vector<8x8xf32> -> vector<8x8xf32>
    %76 = tpu.concatenate %24, %41, %58, %75 in 1 : vector<8x8xf32>, vector<8x8xf32>, vector<8x8xf32>, vector<8x8xf32> -> vector<8x32xf32>
    %77 = vector.extract_strided_slice %7 {offsets = [8, 0], sizes = [8, 8], strides = [1, 1]} : vector<16x96xf32> to vector<8x8xf32>
    %cst_25 = arith.constant 0.353553385 : f32
    %78 = vector.broadcast %cst_25 : f32 to vector<8x8xf32>
    %79 = arith.mulf %77, %78 : vector<8x8xf32>
    %80 = vector.extract_strided_slice %7 {offsets = [8, 32], sizes = [8, 8], strides = [1, 1]} : vector<16x96xf32> to vector<8x8xf32>
    %81 = vector.extract_strided_slice %7 {offsets = [8, 64], sizes = [8, 8], strides = [1, 1]} : vector<16x96xf32> to vector<8x8xf32>
    %cst_26 = arith.constant dense<0.000000e+00> : vector<8x8xf32>
    %82 = tpu.matmul %79, %80, %cst_26 {dimension_numbers = #tpu.dot_dimension_numbers<[1], [1], [0], [0], [0, 0, 1, 0], [], []>} : vector<8x8xf32>, vector<8x8xf32>, vector<8x8xf32> -> vector<8x8xf32>
    %cst_27 = arith.constant dense<0xFF800000> : vector<8xf32>
    %83 = vector.multi_reduction <maximumf>, %82, %cst_27 [1] : vector<8x8xf32> to vector<8xf32>
    %84 = vector.shape_cast %83 : vector<8xf32> to vector<8x1xf32>
    %85 = vector.broadcast %84 : vector<8x1xf32> to vector<8x8xf32>
    %86 = arith.subf %82, %85 : vector<8x8xf32>
    %87 = math.exp %86 : vector<8x8xf32>
    %cst_28 = arith.constant dense<0.000000e+00> : vector<8xf32>
    %88 = vector.multi_reduction <add>, %87, %cst_28 [1] : vector<8x8xf32> to vector<8xf32>
    %89 = vector.shape_cast %88 : vector<8xf32> to vector<8x1xf32>
    %90 = tpu.reciprocal %89 {approx = true} : vector<8x1xf32> -> vector<8x1xf32>
    %91 = vector.broadcast %90 : vector<8x1xf32> to vector<8x8xf32>
    %92 = arith.mulf %87, %91 : vector<8x8xf32>
    %cst_29 = arith.constant dense<0.000000e+00> : vector<8x8xf32>
    %93 = tpu.matmul %92, %81, %cst_29 {dimension_numbers = #tpu.dot_dimension_numbers<[1], [0], [0], [1], [0, 0, 1, 1], [], []>} : vector<8x8xf32>, vector<8x8xf32>, vector<8x8xf32> -> vector<8x8xf32>
    %94 = vector.extract_strided_slice %7 {offsets = [8, 8], sizes = [8, 8], strides = [1, 1]} : vector<16x96xf32> to vector<8x8xf32>
    %cst_30 = arith.constant 0.353553385 : f32
    %95 = vector.broadcast %cst_30 : f32 to vector<8x8xf32>
    %96 = arith.mulf %94, %95 : vector<8x8xf32>
    %97 = vector.extract_strided_slice %7 {offsets = [8, 40], sizes = [8, 8], strides = [1, 1]} : vector<16x96xf32> to vector<8x8xf32>
    %98 = vector.extract_strided_slice %7 {offsets = [8, 72], sizes = [8, 8], strides = [1, 1]} : vector<16x96xf32> to vector<8x8xf32>
    %cst_31 = arith.constant dense<0.000000e+00> : vector<8x8xf32>
    %99 = tpu.matmul %96, %97, %cst_31 {dimension_numbers = #tpu.dot_dimension_numbers<[1], [1], [0], [0], [0, 0, 1, 0], [], []>} : vector<8x8xf32>, vector<8x8xf32>, vector<8x8xf32> -> vector<8x8xf32>
    %cst_32 = arith.constant dense<0xFF800000> : vector<8xf32>
    %100 = vector.multi_reduction <maximumf>, %99, %cst_32 [1] : vector<8x8xf32> to vector<8xf32>
    %101 = vector.shape_cast %100 : vector<8xf32> to vector<8x1xf32>
    %102 = vector.broadcast %101 : vector<8x1xf32> to vector<8x8xf32>
    %103 = arith.subf %99, %102 : vector<8x8xf32>
    %104 = math.exp %103 : vector<8x8xf32>
    %cst_33 = arith.constant dense<0.000000e+00> : vector<8xf32>
    %105 = vector.multi_reduction <add>, %104, %cst_33 [1] : vector<8x8xf32> to vector<8xf32>
    %106 = vector.shape_cast %105 : vector<8xf32> to vector<8x1xf32>
    %107 = tpu.reciprocal %106 {approx = true} : vector<8x1xf32> -> vector<8x1xf32>
    %108 = vector.broadcast %107 : vector<8x1xf32> to vector<8x8xf32>
    %109 = arith.mulf %104, %108 : vector<8x8xf32>
    %cst_34 = arith.constant dense<0.000000e+00> : vector<8x8xf32>
    %110 = tpu.matmul %109, %98, %cst_34 {dimension_numbers = #tpu.dot_dimension_numbers<[1], [0], [0], [1], [0, 0, 1, 1], [], []>} : vector<8x8xf32>, vector<8x8xf32>, vector<8x8xf32> -> vector<8x8xf32>
    %111 = vector.extract_strided_slice %7 {offsets = [8, 16], sizes = [8, 8], strides = [1, 1]} : vector<16x96xf32> to vector<8x8xf32>
    %cst_35 = arith.constant 0.353553385 : f32
    %112 = vector.broadcast %cst_35 : f32 to vector<8x8xf32>
    %113 = arith.mulf %111, %112 : vector<8x8xf32>
    %114 = vector.extract_strided_slice %7 {offsets = [8, 48], sizes = [8, 8], strides = [1, 1]} : vector<16x96xf32> to vector<8x8xf32>
    %115 = vector.extract_strided_slice %7 {offsets = [8, 80], sizes = [8, 8], strides = [1, 1]} : vector<16x96xf32> to vector<8x8xf32>
    %cst_36 = arith.constant dense<0.000000e+00> : vector<8x8xf32>
    %116 = tpu.matmul %113, %114, %cst_36 {dimension_numbers = #tpu.dot_dimension_numbers<[1], [1], [0], [0], [0, 0, 1, 0], [], []>} : vector<8x8xf32>, vector<8x8xf32>, vector<8x8xf32> -> vector<8x8xf32>
    %cst_37 = arith.constant dense<0xFF800000> : vector<8xf32>
    %117 = vector.multi_reduction <maximumf>, %116, %cst_37 [1] : vector<8x8xf32> to vector<8xf32>
    %118 = vector.shape_cast %117 : vector<8xf32> to vector<8x1xf32>
    %119 = vector.broadcast %118 : vector<8x1xf32> to vector<8x8xf32>
    %120 = arith.subf %116, %119 : vector<8x8xf32>
    %121 = math.exp %120 : vector<8x8xf32>
    %cst_38 = arith.constant dense<0.000000e+00> : vector<8xf32>
    %122 = vector.multi_reduction <add>, %121, %cst_38 [1] : vector<8x8xf32> to vector<8xf32>
    %123 = vector.shape_cast %122 : vector<8xf32> to vector<8x1xf32>
    %124 = tpu.reciprocal %123 {approx = true} : vector<8x1xf32> -> vector<8x1xf32>
    %125 = vector.broadcast %124 : vector<8x1xf32> to vector<8x8xf32>
    %126 = arith.mulf %121, %125 : vector<8x8xf32>
    %cst_39 = arith.constant dense<0.000000e+00> : vector<8x8xf32>
    %127 = tpu.matmul %126, %115, %cst_39 {dimension_numbers = #tpu.dot_dimension_numbers<[1], [0], [0], [1], [0, 0, 1, 1], [], []>} : vector<8x8xf32>, vector<8x8xf32>, vector<8x8xf32> -> vector<8x8xf32>
    %128 = vector.extract_strided_slice %7 {offsets = [8, 24], sizes = [8, 8], strides = [1, 1]} : vector<16x96xf32> to vector<8x8xf32>
    %cst_40 = arith.constant 0.353553385 : f32
    %129 = vector.broadcast %cst_40 : f32 to vector<8x8xf32>
    %130 = arith.mulf %128, %129 : vector<8x8xf32>
    %131 = vector.extract_strided_slice %7 {offsets = [8, 56], sizes = [8, 8], strides = [1, 1]} : vector<16x96xf32> to vector<8x8xf32>
    %132 = vector.extract_strided_slice %7 {offsets = [8, 88], sizes = [8, 8], strides = [1, 1]} : vector<16x96xf32> to vector<8x8xf32>
    %cst_41 = arith.constant dense<0.000000e+00> : vector<8x8xf32>
    %133 = tpu.matmul %130, %131, %cst_41 {dimension_numbers = #tpu.dot_dimension_numbers<[1], [1], [0], [0], [0, 0, 1, 0], [], []>} : vector<8x8xf32>, vector<8x8xf32>, vector<8x8xf32> -> vector<8x8xf32>
    %cst_42 = arith.constant dense<0xFF800000> : vector<8xf32>
    %134 = vector.multi_reduction <maximumf>, %133, %cst_42 [1] : vector<8x8xf32> to vector<8xf32>
    %135 = vector.shape_cast %134 : vector<8xf32> to vector<8x1xf32>
    %136 = vector.broadcast %135 : vector<8x1xf32> to vector<8x8xf32>
    %137 = arith.subf %133, %136 : vector<8x8xf32>
    %138 = math.exp %137 : vector<8x8xf32>
    %cst_43 = arith.constant dense<0.000000e+00> : vector<8xf32>
    %139 = vector.multi_reduction <add>, %138, %cst_43 [1] : vector<8x8xf32> to vector<8xf32>
    %140 = vector.shape_cast %139 : vector<8xf32> to vector<8x1xf32>
    %141 = tpu.reciprocal %140 {approx = true} : vector<8x1xf32> -> vector<8x1xf32>
    %142 = vector.broadcast %141 : vector<8x1xf32> to vector<8x8xf32>
    %143 = arith.mulf %138, %142 : vector<8x8xf32>
    %cst_44 = arith.constant dense<0.000000e+00> : vector<8x8xf32>
    %144 = tpu.matmul %143, %132, %cst_44 {dimension_numbers = #tpu.dot_dimension_numbers<[1], [0], [0], [1], [0, 0, 1, 1], [], []>} : vector<8x8xf32>, vector<8x8xf32>, vector<8x8xf32> -> vector<8x8xf32>
    %145 = tpu.concatenate %93, %110, %127, %144 in 1 : vector<8x8xf32>, vector<8x8xf32>, vector<8x8xf32>, vector<8x8xf32> -> vector<8x32xf32>
    %146 = tpu.concatenate %76, %145 in 0 : vector<8x32xf32>, vector<8x32xf32> -> vector<16x32xf32>
    %c0_45 = arith.constant 0 : index
    %c0_46 = arith.constant 0 : index
    %147 = vector.load %arg3[%c0_45, %c0_46] : memref<32x32xf32, #tpu.memory_space<vmem>>, vector<32x32xf32>
    %cst_47 = arith.constant dense<0.000000e+00> : vector<16x32xf32>
    %148 = tpu.matmul %146, %147, %cst_47 {dimension_numbers = #tpu.dot_dimension_numbers<[1], [0], [0], [1], [0, 0, 1, 1], [], []>} : vector<16x32xf32>, vector<32x32xf32>, vector<16x32xf32> -> vector<16x32xf32>
    %c0_48 = arith.constant 0 : index
    %c0_49 = arith.constant 0 : index
    %149 = vector.load %arg4[%c0_48, %c0_49] : memref<1x32xf32, #tpu.memory_space<vmem>>, vector<1x32xf32>
    %150 = vector.shape_cast %149 : vector<1x32xf32> to vector<32xf32>
    %151 = vector.shape_cast %150 : vector<32xf32> to vector<1x32xf32>
    %152 = vector.broadcast %151 : vector<1x32xf32> to vector<16x32xf32>
    %153 = arith.addf %148, %152 : vector<16x32xf32>
    %c0_50 = arith.constant 0 : index
    %c0_51 = arith.constant 0 : index
    %154 = vector.load %arg5[%c0_50, %c0_51] : memref<16x32xf32, #tpu.memory_space<vmem>>, vector<16x32xf32>
    tpu.vector_store %arg5[%c0_50, %c0_51], %153 {strides = array<i32>} : memref<16x32xf32, #tpu.memory_space<vmem>>, vector<16x32xf32>,
    return
  }
}

</mosaic_0001>

<llo_original>
// kernel: tpu_custom_call.1
$region0: #{tpu_custom_call.1}
  #allocation0 [shape = 'u32[]', space=smem, size = 0x4, offset = 0x4, fixed_abs, tag = 'smem constant byte address 0x4 - core index']
  #allocation1 [shape = 'u32[144,128]{1,0:T(1,128)}', space=vmem, size = 0x12000, scoped, tag = 'internal scratch']
  %s0 = inlined_call_operand.hbm [shape: f32[16,32], index: 0, kind: input, shape index: {}]
  %s1 = inlined_call_operand.hbm [shape: f32[32,96], index: 1, kind: input, shape index: {}]
  %s2 = inlined_call_operand.vmem [shape: f32[1,96], index: 2, kind: input, shape index: {}]
  %s3 = inlined_call_operand.hbm [shape: f32[32,32], index: 3, kind: input, shape index: {}]
  %s4 = inlined_call_operand.vmem [shape: f32[1,32], index: 4, kind: input, shape index: {}]
  %s5 = inlined_call_operand.hbm [shape: f32[16,32], index: 5, kind: output, shape index: {}]
  %s6 = sld [smem:[#allocation0]]
  $region42: #{tpu_custom_call.1} parent=0
    _
  %s8 = ssub.s32 1, %s6
  %s9 = scalar_select 0, %s8, %s6
  $region1: #{tpu_custom_call.1} parent=0
    #allocation2 [shape = 'u8[8192]{0}', space=vmem, size = 0x2000, scoped, tag = 'input window, operand 0, single buffered']
    #allocation3 [shape = 's32[1]{0}', space=sflag, size = 0x4, scoped, tag = 'scoped memory for tpu_custom_call.1']
    #allocation4 [shape = 's32[1]{0}', space=sflag, size = 0x4, scoped, tag = 'scoped memory for tpu_custom_call.1']
    #allocation5 [shape = 'u8[16384]{0}', space=vmem, size = 0x4000, scoped, tag = 'input window, operand 1, single buffered']
    #allocation6 [shape = 's32[1]{0}', space=sflag, size = 0x4, scoped, tag = 'scoped memory for tpu_custom_call.1']
    #allocation7 [shape = 'u8[16384]{0}', space=vmem, size = 0x4000, scoped, tag = 'input window, operand 3, single buffered']
    #allocation8 [shape = 'u8[8192]{0}', space=vmem, size = 0x2000, scoped, tag = 'output window, operand 0, single buffered']
    %10 = vsyncpa [#allocation3], 0
    %11 = vsyncpa [#allocation6], 0
    %12 = vsyncpa [#allocation4], 0
    // Predicated region
    $region2: #{tpu_custom_call.1} parent=1 // pred_check
      _
    $region3: #{tpu_custom_call.1} parent=1 // pred_check_branch
      %14 = sbr.rel (0) target = $region5
    $region4: #{tpu_custom_call.1} parent=1 // pred_region
      %s16 = ssub.s32 256, 256
      %17 = vsyncadd [#allocation3], %s16
      %s18 = sshll.u32 [#allocation2], 4
      %s19 = int_to_ptr.vmem [resolvable:$true] %s18
      %24 = dma.hbm_to_vmem [thread:$0]  %s0, 256, %s19, [#allocation3], 128, 128, 8
    $region5: #{tpu_custom_call.1} parent=1 // pred_fallthru
      _
    // Predicated region
    $region6: #{tpu_custom_call.1} parent=1 // pred_check
      _
    $region7: #{tpu_custom_call.1} parent=1 // pred_check_branch
      %26 = sbr.rel (0) target = $region9
    $region8: #{tpu_custom_call.1} parent=1 // pred_region
      %s28 = ssub.s32 512, 512
      %29 = vsyncadd [#allocation6], %s28
      %s30 = sshll.u32 [#allocation5], 4
      %s31 = int_to_ptr.vmem [resolvable:$true] %s30
      %36 = dma.hbm_to_vmem [thread:$0]  %s1, 512, %s31, [#allocation6], 128, 128, 8
    $region9: #{tpu_custom_call.1} parent=1 // pred_fallthru
      _
    // Predicated region
    $region10: #{tpu_custom_call.1} parent=1 // pred_check
      _
    $region11: #{tpu_custom_call.1} parent=1 // pred_check_branch
      %38 = sbr.rel (0) target = $region13
    $region12: #{tpu_custom_call.1} parent=1 // pred_region
      _
    $region13: #{tpu_custom_call.1} parent=1 // pred_fallthru
      _
    // Predicated region
    $region14: #{tpu_custom_call.1} parent=1 // pred_check
      _
    $region15: #{tpu_custom_call.1} parent=1 // pred_check_branch
      %40 = sbr.rel (0) target = $region17
    $region16: #{tpu_custom_call.1} parent=1 // pred_region
      %s42 = ssub.s32 512, 512
      %43 = vsyncadd [#allocation6], %s42
      %s44 = sshll.u32 [#allocation7], 4
      %s45 = int_to_ptr.vmem [resolvable:$true] %s44
      %50 = dma.hbm_to_vmem [thread:$0]  %s3, 512, %s45, [#allocation6], 128, 128, 8
    $region17: #{tpu_custom_call.1} parent=1 // pred_fallthru
      _
    // Predicated region
    $region18: #{tpu_custom_call.1} parent=1 // pred_check
      _
    $region19: #{tpu_custom_call.1} parent=1 // pred_check_branch
      %52 = sbr.rel (0) target = $region21
    $region20: #{tpu_custom_call.1} parent=1 // pred_region
      _
    $region21: #{tpu_custom_call.1} parent=1 // pred_fallthru
      _
    // Predicated region
    $region22: #{tpu_custom_call.1} parent=1 // pred_check
      _
    $region23: #{tpu_custom_call.1} parent=1 // pred_check_branch
      %54 = sbr.rel (0) target = $region25
    $region24: #{tpu_custom_call.1} parent=1 // pred_region
      %55 = dma.done [#allocation3], 256
    $region25: #{tpu_custom_call.1} parent=1 // pred_fallthru
      _
    // Predicated region
    $region26: #{tpu_custom_call.1} parent=1 // pred_check
      _
    $region27: #{tpu_custom_call.1} parent=1 // pred_check_branch
      %57 = sbr.rel (0) target = $region29
    $region28: #{tpu_custom_call.1} parent=1 // pred_region
      %58 = dma.done [#allocation6], 512
    $region29: #{tpu_custom_call.1} parent=1 // pred_fallthru
      _
    // Predicated region
    $region30: #{tpu_custom_call.1} parent=1 // pred_check
      _
    $region31: #{tpu_custom_call.1} parent=1 // pred_check_branch
      %60 = sbr.rel (0) target = $region33
    $region32: #{tpu_custom_call.1} parent=1 // pred_region
      %61 = dma.done [#allocation6], 512
    $region33: #{tpu_custom_call.1} parent=1 // pred_fallthru
      _
    %v62 = vld [vmem:[#allocation2] sm:$0xff]
    %v63 = vld [vmem:[#allocation2 + $0x8] sm:$0xff]
    %v64 = vld [vmem:[#allocation5] sm:$0xff]
    %v65 = vld [vmem:[#allocation5 + $0x8] sm:$0xff]
    %v66 = vld [vmem:[#allocation5 + $0x10] sm:$0xff]
    %v67 = vld [vmem:[#allocation5 + $0x18] sm:$0xff]
    %v68 = vld [vmem:[%s2] sm:$0x1]
    %v70 = vlaneseq
    %v71 = vshrl.u32 %v70, 7
    %v72 = vsub.s32 0, %v71
    %v73 = vrot.slane %v68, %v72
    %vm75 = vcmask 261120
    %v77 = vsel %vm75, %v62, 0
    %v80 = vsel %vm75, %v63, 0
    %82 = vmatprep.subr.mxu0 0.0
    %83 = vmatpush1.msra.mxu0 %v64
    %84 = vmatprep.subr.mxu0 0.0
    %85 = vmatpush1.msra.mxu0 %v65
    %86 = vmatprep.subr.mxu0 0.0
    %87 = vmatpush1.msra.mxu0 %v66
    %88 = vmatprep.subr.mxu0 0.0
    %89 = vmatpush1.msra.mxu0 %v67
    %90 = vmatprep.subr.mxu0 0.0
    %91 = vmatpush1.msra.mxu0 0.0
    %92 = vmatprep.subr.mxu0 0.0
    %93 = vmatpush1.msra.mxu0 0.0
    %94 = vmatprep.subr.mxu0 0.0
    %95 = vmatpush1.msra.mxu0 0.0
    %96 = vmatprep.subr.mxu0 0.0
    %97 = vmatpush1.msra.mxu0 0.0
    %98 = vmatprep.subr.mxu0 0.0
    %99 = vmatpush1.msra.mxu0 0.0
    %100 = vmatprep.subr.mxu0 0.0
    %101 = vmatpush1.msra.mxu0 0.0
    %102 = vmatprep.subr.mxu0 0.0
    %103 = vmatpush1.msra.mxu0 0.0
    %104 = vmatprep.subr.mxu0 0.0
    %105 = vmatpush1.msra.mxu0 0.0
    %106 = vmatprep.subr.mxu0 0.0
    %107 = vmatpush1.msra.mxu0 0.0
    %108 = vmatprep.subr.mxu0 0.0
    %109 = vmatpush1.msra.mxu0 0.0
    %110 = vmatprep.subr.mxu0 0.0
    %111 = vmatpush1.msra.mxu0 0.0
    %112 = vmatprep.subr.mxu0 0.0
    %113 = vmatpush1.msra.mxu0 0.0
    %114 = vmatprep.subr.mxu0 0.0
    %115 = vmatpush1.msra.mxu0 0.0
    %116 = vmatprep.subr.mxu0 0.0
    %117 = vmatpush1.msra.mxu0 0.0
    %118 = vmatprep.subr.mxu0 0.0
    %119 = vmatpush1.msra.mxu0 0.0
    %120 = vmatprep.subr.mxu0 0.0
    %121 = vmatpush1.msra.mxu0 0.0
    %122 = vmatprep.subr.mxu0 0.0
    %123 = vmatpush1.msra.mxu0 0.0
    %124 = vmatprep.subr.mxu0 0.0
    %125 = vmatpush1.msra.mxu0 0.0
    %126 = vmatprep.subr.mxu0 0.0
    %127 = vmatpush1.msra.mxu0 0.0
    %128 = vmatprep.subr.mxu0 0.0
    %129 = vmatpush1.msra.mxu0 0.0
    %130 = vmatprep.subr.mxu0 0.0
    %131 = vmatpush1.msra.mxu0 0.0
    %132 = vmatprep.subr.mxu0 0.0
    %133 = vmatpush1.msra.mxu0 0.0
    %134 = vmatprep.subr.mxu0 0.0
    %135 = vmatpush1.msra.mxu0 0.0
    %136 = vmatprep.subr.mxu0 0.0
    %137 = vmatpush1.msra.mxu0 0.0
    %138 = vmatprep.subr.mxu0 0.0
    %139 = vmatpush1.msra.mxu0 0.0
    %140 = vmatprep.subr.mxu0 0.0
    %141 = vmatpush1.msra.mxu0 0.0
    %142 = vmatprep.subr.mxu0 0.0
    %143 = vmatpush1.msra.mxu0 0.0
    %144 = vmatprep.subr.mxu0 0.0
    %145 = vmatpush1.msra.mxu0 0.0
    %146 = vmatprep.mubr.f32.mxu0 0.0
    %147 = vmatmul.mubr.f32.gmra.mrb[0].mxu0 %v77
    %v148 = vpop.f32.mrb[0].mxu0
    %v149 = vadd.f32 %v73, %v148
    %v150 = vpop.f32.mrb[0].mxu0
    %151 = vmatprep.mubr.f32.mxu0 0.0
    %152 = vmatmul.mubr.f32.gmra.mrb[0].mxu0 %v80
    %v153 = vpop.f32.mrb[0].mxu0
    %v154 = vadd.f32 %v73, %v153
    %v155 = vpop.f32.mrb[0].mxu0
    %156 = vdwg.mxu0
    %v157 = vmul.f32 %v149, 0.35355338
    %159 = vrot.lane.b32.xlu0 %v149, 96
    %v160 = vpop.permute.xlu0 %159
    %vm161 = vcmask 64512
    %v163 = vsel %vm161, %v157, 0
    %v165 = vsel %vm161, %v160, 0
    %167 = vmatprep.subr.mxu0 0.0
    %168 = vmatpush1.xpose.msra.mxu0 %v165
    %169 = vmatprep.subr.mxu0 0.0
    %170 = vmatpush1.xpose.msra.mxu0 0.0
    %171 = vmatprep.subr.mxu0 0.0
    %172 = vmatpush1.xpose.msra.mxu0 0.0
    %173 = vmatprep.subr.mxu0 0.0
    %174 = vmatpush1.xpose.msra.mxu0 0.0
    %175 = vmatprep.subr.mxu0 0.0
    %176 = vmatpush1.xpose.msra.mxu0 0.0
    %177 = vmatprep.subr.mxu0 0.0
    %178 = vmatpush1.xpose.msra.mxu0 0.0
    %179 = vmatprep.subr.mxu0 0.0
    %180 = vmatpush1.xpose.msra.mxu0 0.0
    %181 = vmatprep.subr.mxu0 0.0
    %182 = vmatpush1.xpose.msra.mxu0 0.0
    %183 = vmatprep.subr.mxu0 0.0
    %184 = vmatpush1.xpose.msra.mxu0 0.0
    %185 = vmatprep.subr.mxu0 0.0
    %186 = vmatpush1.xpose.msra.mxu0 0.0
    %187 = vmatprep.subr.mxu0 0.0
    %188 = vmatpush1.xpose.msra.mxu0 0.0
    %189 = vmatprep.subr.mxu0 0.0
    %190 = vmatpush1.xpose.msra.mxu0 0.0
    %191 = vmatprep.subr.mxu0 0.0
    %192 = vmatpush1.xpose.msra.mxu0 0.0
    %193 = vmatprep.subr.mxu0 0.0
    %194 = vmatpush1.xpose.msra.mxu0 0.0
    %195 = vmatprep.subr.mxu0 0.0
    %196 = vmatpush1.xpose.msra.mxu0 0.0
    %197 = vmatprep.subr.mxu0 0.0
    %198 = vmatpush1.xpose.msra.mxu0 0.0
    %199 = vmatprep.subr.mxu0 0.0
    %200 = vmatpush1.xpose.msra.mxu0 0.0
    %201 = vmatprep.subr.mxu0 0.0
    %202 = vmatpush1.xpose.msra.mxu0 0.0
    %203 = vmatprep.subr.mxu0 0.0
    %204 = vmatpush1.xpose.msra.mxu0 0.0
    %205 = vmatprep.subr.mxu0 0.0
    %206 = vmatpush1.xpose.msra.mxu0 0.0
    %207 = vmatprep.subr.mxu0 0.0
    %208 = vmatpush1.xpose.msra.mxu0 0.0
    %209 = vmatprep.subr.mxu0 0.0
    %210 = vmatpush1.xpose.msra.mxu0 0.0
    %211 = vmatprep.subr.mxu0 0.0
    %212 = vmatpush1.xpose.msra.mxu0 0.0
    %213 = vmatprep.subr.mxu0 0.0
    %214 = vmatpush1.xpose.msra.mxu0 0.0
    %215 = vmatprep.subr.mxu0 0.0
    %216 = vmatpush1.xpose.msra.mxu0 0.0
    %217 = vmatprep.subr.mxu0 0.0
    %218 = vmatpush1.xpose.msra.mxu0 0.0
    %219 = vmatprep.subr.mxu0 0.0
    %220 = vmatpush1.xpose.msra.mxu0 0.0
    %221 = vmatprep.subr.mxu0 0.0
    %222 = vmatpush1.xpose.msra.mxu0 0.0
    %223 = vmatprep.subr.mxu0 0.0
    %224 = vmatpush1.xpose.msra.mxu0 0.0
    %225 = vmatprep.subr.mxu0 0.0
    %226 = vmatpush1.xpose.msra.mxu0 0.0
    %227 = vmatprep.subr.mxu0 0.0
    %228 = vmatpush1.xpose.msra.mxu0 0.0
    %229 = vmatprep.subr.mxu0 0.0
    %230 = vmatpush1.xpose.msra.mxu0 0.0
    %231 = vmatprep.mubr.f32.mxu0 0.0
    %232 = vmatmul.mubr.f32.gmra.mrb[0].mxu0 %v163
    %v233 = vpop.f32.mrb[0].mxu0
    %v234 = vadd.f32 0.0, %v233
    %v235 = vpop.f32.mrb[0].mxu0
    %236 = vdwg.mxu0
    %v237 = vsel %vm161, %v234, -inf
    %238 = vmax.xlane.f32.xlu0 %v237
    %v239 = vpop.xlane.xlu0 %238
    %v240 = vsub.f32 %v234, %v239
    %v241 = vmul.f32 %v240, 1.442695
    %v242 = vpow.pop %v241
    %v243 = vsel %vm161, %v242, 0.0
    %244 = vadd.xlane.f32.xlu0 %v243
    %v245 = vpop.xlane.xlu0 %244
    %v246 = vrcp.pop %v245
    %v247 = vmul.f32 %v242, %v246
    %248 = vrot.lane.b32.xlu0 %v149, 64
    %v249 = vpop.permute.xlu0 %248
    %v252 = vsel %vm161, %v247, 0
    %254 = vmatprep.subr.mxu0 0.0
    %255 = vmatpush1.msra.mxu0 %v249
    %256 = vmatprep.subr.mxu0 0.0
    %257 = vmatpush1.msra.mxu0 0.0
    %258 = vmatprep.subr.mxu0 0.0
    %259 = vmatpush1.msra.mxu0 0.0
    %260 = vmatprep.subr.mxu0 0.0
    %261 = vmatpush1.msra.mxu0 0.0
    %262 = vmatprep.subr.mxu0 0.0
    %263 = vmatpush1.msra.mxu0 0.0
    %264 = vmatprep.subr.mxu0 0.0
    %265 = vmatpush1.msra.mxu0 0.0
    %266 = vmatprep.subr.mxu0 0.0
    %267 = vmatpush1.msra.mxu0 0.0
    %268 = vmatprep.subr.mxu0 0.0
    %269 = vmatpush1.msra.mxu0 0.0
    %270 = vmatprep.subr.mxu0 0.0
    %271 = vmatpush1.msra.mxu0 0.0
    %272 = vmatprep.subr.mxu0 0.0
    %273 = vmatpush1.msra.mxu0 0.0
    %274 = vmatprep.subr.mxu0 0.0
    %275 = vmatpush1.msra.mxu0 0.0
    %276 = vmatprep.subr.mxu0 0.0
    %277 = vmatpush1.msra.mxu0 0.0
    %278 = vmatprep.subr.mxu0 0.0
    %279 = vmatpush1.msra.mxu0 0.0
    %280 = vmatprep.subr.mxu0 0.0
    %281 = vmatpush1.msra.mxu0 0.0
    %282 = vmatprep.subr.mxu0 0.0
    %283 = vmatpush1.msra.mxu0 0.0
    %284 = vmatprep.subr.mxu0 0.0
    %285 = vmatpush1.msra.mxu0 0.0
    %286 = vmatprep.subr.mxu0 0.0
    %287 = vmatpush1.msra.mxu0 0.0
    %288 = vmatprep.subr.mxu0 0.0
    %289 = vmatpush1.msra.mxu0 0.0
    %290 = vmatprep.subr.mxu0 0.0
    %291 = vmatpush1.msra.mxu0 0.0
    %292 = vmatprep.subr.mxu0 0.0
    %293 = vmatpush1.msra.mxu0 0.0
    %294 = vmatprep.subr.mxu0 0.0
    %295 = vmatpush1.msra.mxu0 0.0
    %296 = vmatprep.subr.mxu0 0.0
    %297 = vmatpush1.msra.mxu0 0.0
    %298 = vmatprep.subr.mxu0 0.0
    %299 = vmatpush1.msra.mxu0 0.0
    %300 = vmatprep.subr.mxu0 0.0
    %301 = vmatpush1.msra.mxu0 0.0
    %302 = vmatprep.subr.mxu0 0.0
    %303 = vmatpush1.msra.mxu0 0.0
    %304 = vmatprep.subr.mxu0 0.0
    %305 = vmatpush1.msra.mxu0 0.0
    %306 = vmatprep.subr.mxu0 0.0
    %307 = vmatpush1.msra.mxu0 0.0
    %308 = vmatprep.subr.mxu0 0.0
    %309 = vmatpush1.msra.mxu0 0.0
    %310 = vmatprep.subr.mxu0 0.0
    %311 = vmatpush1.msra.mxu0 0.0
    %312 = vmatprep.subr.mxu0 0.0
    %313 = vmatpush1.msra.mxu0 0.0
    %314 = vmatprep.subr.mxu0 0.0
    %315 = vmatpush1.msra.mxu0 0.0
    %316 = vmatprep.subr.mxu0 0.0
    %317 = vmatpush1.msra.mxu0 0.0
    %318 = vmatprep.mubr.f32.mxu0 0.0
    %319 = vmatmul.mubr.f32.gmra.mrb[0].mxu0 %v252
    %v320 = vpop.f32.mrb[0].mxu0
    %v321 = vadd.f32 0.0, %v320
    %v322 = vpop.f32.mrb[0].mxu0
    %323 = vdwg.mxu0
    %324 = vrot.lane.b32.xlu0 %v157, 120
    %v325 = vpop.permute.xlu0 %324
    %326 = vrot.lane.b32.xlu0 %v149, 88
    %v327 = vpop.permute.xlu0 %326
    %v328 = vsel %vm161, %v325, 0
    %v330 = vsel %vm161, %v327, 0
    %332 = vmatprep.subr.mxu0 0.0
    %333 = vmatpush1.xpose.msra.mxu0 %v330
    %334 = vmatprep.subr.mxu0 0.0
    %335 = vmatpush1.xpose.msra.mxu0 0.0
    %336 = vmatprep.subr.mxu0 0.0
    %337 = vmatpush1.xpose.msra.mxu0 0.0
    %338 = vmatprep.subr.mxu0 0.0
    %339 = vmatpush1.xpose.msra.mxu0 0.0
    %340 = vmatprep.subr.mxu0 0.0
    %341 = vmatpush1.xpose.msra.mxu0 0.0
    %342 = vmatprep.subr.mxu0 0.0
    %343 = vmatpush1.xpose.msra.mxu0 0.0
    %344 = vmatprep.subr.mxu0 0.0
    %345 = vmatpush1.xpose.msra.mxu0 0.0
    %346 = vmatprep.subr.mxu0 0.0
    %347 = vmatpush1.xpose.msra.mxu0 0.0
    %348 = vmatprep.subr.mxu0 0.0
    %349 = vmatpush1.xpose.msra.mxu0 0.0
    %350 = vmatprep.subr.mxu0 0.0
    %351 = vmatpush1.xpose.msra.mxu0 0.0
    %352 = vmatprep.subr.mxu0 0.0
    %353 = vmatpush1.xpose.msra.mxu0 0.0
    %354 = vmatprep.subr.mxu0 0.0
    %355 = vmatpush1.xpose.msra.mxu0 0.0
    %356 = vmatprep.subr.mxu0 0.0
    %357 = vmatpush1.xpose.msra.mxu0 0.0
    %358 = vmatprep.subr.mxu0 0.0
    %359 = vmatpush1.xpose.msra.mxu0 0.0
    %360 = vmatprep.subr.mxu0 0.0
    %361 = vmatpush1.xpose.msra.mxu0 0.0
    %362 = vmatprep.subr.mxu0 0.0
    %363 = vmatpush1.xpose.msra.mxu0 0.0
    %364 = vmatprep.subr.mxu0 0.0
    %365 = vmatpush1.xpose.msra.mxu0 0.0
    %366 = vmatprep.subr.mxu0 0.0
    %367 = vmatpush1.xpose.msra.mxu0 0.0
    %368 = vmatprep.subr.mxu0 0.0
    %369 = vmatpush1.xpose.msra.mxu0 0.0
    %370 = vmatprep.subr.mxu0 0.0
    %371 = vmatpush1.xpose.msra.mxu0 0.0
    %372 = vmatprep.subr.mxu0 0.0
    %373 = vmatpush1.xpose.msra.mxu0 0.0
    %374 = vmatprep.subr.mxu0 0.0
    %375 = vmatpush1.xpose.msra.mxu0 0.0
    %376 = vmatprep.subr.mxu0 0.0
    %377 = vmatpush1.xpose.msra.mxu0 0.0
    %378 = vmatprep.subr.mxu0 0.0
    %379 = vmatpush1.xpose.msra.mxu0 0.0
    %380 = vmatprep.subr.mxu0 0.0
    %381 = vmatpush1.xpose.msra.mxu0 0.0
    %382 = vmatprep.subr.mxu0 0.0
    %383 = vmatpush1.xpose.msra.mxu0 0.0
    %384 = vmatprep.subr.mxu0 0.0
    %385 = vmatpush1.xpose.msra.mxu0 0.0
    %386 = vmatprep.subr.mxu0 0.0
    %387 = vmatpush1.xpose.msra.mxu0 0.0
    %388 = vmatprep.subr.mxu0 0.0
    %389 = vmatpush1.xpose.msra.mxu0 0.0
    %390 = vmatprep.subr.mxu0 0.0
    %391 = vmatpush1.xpose.msra.mxu0 0.0
    %392 = vmatprep.subr.mxu0 0.0
    %393 = vmatpush1.xpose.msra.mxu0 0.0
    %394 = vmatprep.subr.mxu0 0.0
    %395 = vmatpush1.xpose.msra.mxu0 0.0
    %396 = vmatprep.mubr.f32.mxu0 0.0
    %397 = vmatmul.mubr.f32.gmra.mrb[0].mxu0 %v328
    %v398 = vpop.f32.mrb[0].mxu0
    %v399 = vadd.f32 0.0, %v398
    %v400 = vpop.f32.mrb[0].mxu0
    %401 = vdwg.mxu0
    %v402 = vsel %vm161, %v399, -inf
    %403 = vmax.xlane.f32.xlu0 %v402
    %v404 = vpop.xlane.xlu0 %403
    %v405 = vsub.f32 %v399, %v404
    %v406 = vmul.f32 %v405, 1.442695
    %v407 = vpow.pop %v406
    %v408 = vsel %vm161, %v407, 0.0
    %409 = vadd.xlane.f32.xlu0 %v408
    %v410 = vpop.xlane.xlu0 %409
    %v411 = vrcp.pop %v410
    %v412 = vmul.f32 %v407, %v411
    %413 = vrot.lane.b32.xlu0 %v149, 56
    %v414 = vpop.permute.xlu0 %413
    %v417 = vsel %vm161, %v412, 0
    %419 = vmatprep.subr.mxu0 0.0
    %420 = vmatpush1.msra.mxu0 %v414
    %421 = vmatprep.subr.mxu0 0.0
    %422 = vmatpush1.msra.mxu0 0.0
    %423 = vmatprep.subr.mxu0 0.0
    %424 = vmatpush1.msra.mxu0 0.0
    %425 = vmatprep.subr.mxu0 0.0
    %426 = vmatpush1.msra.mxu0 0.0
    %427 = vmatprep.subr.mxu0 0.0
    %428 = vmatpush1.msra.mxu0 0.0
    %429 = vmatprep.subr.mxu0 0.0
    %430 = vmatpush1.msra.mxu0 0.0
    %431 = vmatprep.subr.mxu0 0.0
    %432 = vmatpush1.msra.mxu0 0.0
    %433 = vmatprep.subr.mxu0 0.0
    %434 = vmatpush1.msra.mxu0 0.0
    %435 = vmatprep.subr.mxu0 0.0
    %436 = vmatpush1.msra.mxu0 0.0
    %437 = vmatprep.subr.mxu0 0.0
    %438 = vmatpush1.msra.mxu0 0.0
    %439 = vmatprep.subr.mxu0 0.0
    %440 = vmatpush1.msra.mxu0 0.0
    %441 = vmatprep.subr.mxu0 0.0
    %442 = vmatpush1.msra.mxu0 0.0
    %443 = vmatprep.subr.mxu0 0.0
    %444 = vmatpush1.msra.mxu0 0.0
    %445 = vmatprep.subr.mxu0 0.0
    %446 = vmatpush1.msra.mxu0 0.0
    %447 = vmatprep.subr.mxu0 0.0
    %448 = vmatpush1.msra.mxu0 0.0
    %449 = vmatprep.subr.mxu0 0.0
    %450 = vmatpush1.msra.mxu0 0.0
    %451 = vmatprep.subr.mxu0 0.0
    %452 = vmatpush1.msra.mxu0 0.0
    %453 = vmatprep.subr.mxu0 0.0
    %454 = vmatpush1.msra.mxu0 0.0
    %455 = vmatprep.subr.mxu0 0.0
    %456 = vmatpush1.msra.mxu0 0.0
    %457 = vmatprep.subr.mxu0 0.0
    %458 = vmatpush1.msra.mxu0 0.0
    %459 = vmatprep.subr.mxu0 0.0
    %460 = vmatpush1.msra.mxu0 0.0
    %461 = vmatprep.subr.mxu0 0.0
    %462 = vmatpush1.msra.mxu0 0.0
    %463 = vmatprep.subr.mxu0 0.0
    %464 = vmatpush1.msra.mxu0 0.0
    %465 = vmatprep.subr.mxu0 0.0
    %466 = vmatpush1.msra.mxu0 0.0
    %467 = vmatprep.subr.mxu0 0.0
    %468 = vmatpush1.msra.mxu0 0.0
    %469 = vmatprep.subr.mxu0 0.0
    %470 = vmatpush1.msra.mxu0 0.0
    %471 = vmatprep.subr.mxu0 0.0
    %472 = vmatpush1.msra.mxu0 0.0
    %473 = vmatprep.subr.mxu0 0.0
    %474 = vmatpush1.msra.mxu0 0.0
    %475 = vmatprep.subr.mxu0 0.0
    %476 = vmatpush1.msra.mxu0 0.0
    %477 = vmatprep.subr.mxu0 0.0
    %478 = vmatpush1.msra.mxu0 0.0
    %479 = vmatprep.subr.mxu0 0.0
    %480 = vmatpush1.msra.mxu0 0.0
    %481 = vmatprep.subr.mxu0 0.0
    %482 = vmatpush1.msra.mxu0 0.0
    %483 = vmatprep.mubr.f32.mxu0 0.0
    %484 = vmatmul.mubr.f32.gmra.mrb[0].mxu0 %v417
    %v485 = vpop.f32.mrb[0].mxu0
    %v486 = vadd.f32 0.0, %v485
    %v487 = vpop.f32.mrb[0].mxu0
    %488 = vdwg.mxu0
    %489 = vrot.lane.b32.xlu0 %v157, 112
    %v490 = vpop.permute.xlu0 %489
    %491 = vrot.lane.b32.xlu0 %v149, 80
    %v492 = vpop.permute.xlu0 %491
    %v493 = vsel %vm161, %v490, 0
    %v495 = vsel %vm161, %v492, 0
    %497 = vmatprep.subr.mxu0 0.0
    %498 = vmatpush1.xpose.msra.mxu0 %v495
    %499 = vmatprep.subr.mxu0 0.0
    %500 = vmatpush1.xpose.msra.mxu0 0.0
    %501 = vmatprep.subr.mxu0 0.0
    %502 = vmatpush1.xpose.msra.mxu0 0.0
    %503 = vmatprep.subr.mxu0 0.0
    %504 = vmatpush1.xpose.msra.mxu0 0.0
    %505 = vmatprep.subr.mxu0 0.0
    %506 = vmatpush1.xpose.msra.mxu0 0.0
    %507 = vmatprep.subr.mxu0 0.0
    %508 = vmatpush1.xpose.msra.mxu0 0.0
    %509 = vmatprep.subr.mxu0 0.0
    %510 = vmatpush1.xpose.msra.mxu0 0.0
    %511 = vmatprep.subr.mxu0 0.0
    %512 = vmatpush1.xpose.msra.mxu0 0.0
    %513 = vmatprep.subr.mxu0 0.0
    %514 = vmatpush1.xpose.msra.mxu0 0.0
    %515 = vmatprep.subr.mxu0 0.0
    %516 = vmatpush1.xpose.msra.mxu0 0.0
    %517 = vmatprep.subr.mxu0 0.0
    %518 = vmatpush1.xpose.msra.mxu0 0.0
    %519 = vmatprep.subr.mxu0 0.0
    %520 = vmatpush1.xpose.msra.mxu0 0.0
    %521 = vmatprep.subr.mxu0 0.0
    %522 = vmatpush1.xpose.msra.mxu0 0.0
    %523 = vmatprep.subr.mxu0 0.0
    %524 = vmatpush1.xpose.msra.mxu0 0.0
    %525 = vmatprep.subr.mxu0 0.0
    %526 = vmatpush1.xpose.msra.mxu0 0.0
    %527 = vmatprep.subr.mxu0 0.0
    %528 = vmatpush1.xpose.msra.mxu0 0.0
    %529 = vmatprep.subr.mxu0 0.0
    %530 = vmatpush1.xpose.msra.mxu0 0.0
    %531 = vmatprep.subr.mxu0 0.0
    %532 = vmatpush1.xpose.msra.mxu0 0.0
    %533 = vmatprep.subr.mxu0 0.0
    %534 = vmatpush1.xpose.msra.mxu0 0.0
    %535 = vmatprep.subr.mxu0 0.0
    %536 = vmatpush1.xpose.msra.mxu0 0.0
    %537 = vmatprep.subr.mxu0 0.0
    %538 = vmatpush1.xpose.msra.mxu0 0.0
    %539 = vmatprep.subr.mxu0 0.0
    %540 = vmatpush1.xpose.msra.mxu0 0.0
    %541 = vmatprep.subr.mxu0 0.0
    %542 = vmatpush1.xpose.msra.mxu0 0.0
    %543 = vmatprep.subr.mxu0 0.0
    %544 = vmatpush1.xpose.msra.mxu0 0.0
    %545 = vmatprep.subr.mxu0 0.0
    %546 = vmatpush1.xpose.msra.mxu0 0.0
    %547 = vmatprep.subr.mxu0 0.0
    %548 = vmatpush1.xpose.msra.mxu0 0.0
    %549 = vmatprep.subr.mxu0 0.0
    %550 = vmatpush1.xpose.msra.mxu0 0.0
    %551 = vmatprep.subr.mxu0 0.0
    %552 = vmatpush1.xpose.msra.mxu0 0.0
    %553 = vmatprep.subr.mxu0 0.0
    %554 = vmatpush1.xpose.msra.mxu0 0.0
    %555 = vmatprep.subr.mxu0 0.0
    %556 = vmatpush1.xpose.msra.mxu0 0.0
    %557 = vmatprep.subr.mxu0 0.0
    %558 = vmatpush1.xpose.msra.mxu0 0.0
    %559 = vmatprep.subr.mxu0 0.0
    %560 = vmatpush1.xpose.msra.mxu0 0.0
    %561 = vmatprep.mubr.f32.mxu0 0.0
    %562 = vmatmul.mubr.f32.gmra.mrb[0].mxu0 %v493
    %v563 = vpop.f32.mrb[0].mxu0
    %v564 = vadd.f32 0.0, %v563
    %v565 = vpop.f32.mrb[0].mxu0
    %566 = vdwg.mxu0
    %v567 = vsel %vm161, %v564, -inf
    %568 = vmax.xlane.f32.xlu0 %v567
    %v569 = vpop.xlane.xlu0 %568
    %v570 = vsub.f32 %v564, %v569
    %v571 = vmul.f32 %v570, 1.442695
    %v572 = vpow.pop %v571
    %v573 = vsel %vm161, %v572, 0.0
    %574 = vadd.xlane.f32.xlu0 %v573
    %v575 = vpop.xlane.xlu0 %574
    %v576 = vrcp.pop %v575
    %v577 = vmul.f32 %v572, %v576
    %578 = vrot.lane.b32.xlu0 %v149, 48
    %v579 = vpop.permute.xlu0 %578
    %v582 = vsel %vm161, %v577, 0
    %584 = vmatprep.subr.mxu0 0.0
    %585 = vmatpush1.msra.mxu0 %v579
    %586 = vmatprep.subr.mxu0 0.0
    %587 = vmatpush1.msra.mxu0 0.0
    %588 = vmatprep.subr.mxu0 0.0
    %589 = vmatpush1.msra.mxu0 0.0
    %590 = vmatprep.subr.mxu0 0.0
    %591 = vmatpush1.msra.mxu0 0.0
    %592 = vmatprep.subr.mxu0 0.0
    %593 = vmatpush1.msra.mxu0 0.0
    %594 = vmatprep.subr.mxu0 0.0
    %595 = vmatpush1.msra.mxu0 0.0
    %596 = vmatprep.subr.mxu0 0.0
    %597 = vmatpush1.msra.mxu0 0.0
    %598 = vmatprep.subr.mxu0 0.0
    %599 = vmatpush1.msra.mxu0 0.0
    %600 = vmatprep.subr.mxu0 0.0
    %601 = vmatpush1.msra.mxu0 0.0
    %602 = vmatprep.subr.mxu0 0.0
    %603 = vmatpush1.msra.mxu0 0.0
    %604 = vmatprep.subr.mxu0 0.0
    %605 = vmatpush1.msra.mxu0 0.0
    %606 = vmatprep.subr.mxu0 0.0
    %607 = vmatpush1.msra.mxu0 0.0
    %608 = vmatprep.subr.mxu0 0.0
    %609 = vmatpush1.msra.mxu0 0.0
    %610 = vmatprep.subr.mxu0 0.0
    %611 = vmatpush1.msra.mxu0 0.0
    %612 = vmatprep.subr.mxu0 0.0
    %613 = vmatpush1.msra.mxu0 0.0
    %614 = vmatprep.subr.mxu0 0.0
    %615 = vmatpush1.msra.mxu0 0.0
    %616 = vmatprep.subr.mxu0 0.0
    %617 = vmatpush1.msra.mxu0 0.0
    %618 = vmatprep.subr.mxu0 0.0
    %619 = vmatpush1.msra.mxu0 0.0
    %620 = vmatprep.subr.mxu0 0.0
    %621 = vmatpush1.msra.mxu0 0.0
    %622 = vmatprep.subr.mxu0 0.0
    %623 = vmatpush1.msra.mxu0 0.0
    %624 = vmatprep.subr.mxu0 0.0
    %625 = vmatpush1.msra.mxu0 0.0
    %626 = vmatprep.subr.mxu0 0.0
    %627 = vmatpush1.msra.mxu0 0.0
    %628 = vmatprep.subr.mxu0 0.0
    %629 = vmatpush1.msra.mxu0 0.0
    %630 = vmatprep.subr.mxu0 0.0
    %631 = vmatpush1.msra.mxu0 0.0
    %632 = vmatprep.subr.mxu0 0.0
    %633 = vmatpush1.msra.mxu0 0.0
    %634 = vmatprep.subr.mxu0 0.0
    %635 = vmatpush1.msra.mxu0 0.0
    %636 = vmatprep.subr.mxu0 0.0
    %637 = vmatpush1.msra.mxu0 0.0
    %638 = vmatprep.subr.mxu0 0.0
    %639 = vmatpush1.msra.mxu0 0.0
    %640 = vmatprep.subr.mxu0 0.0
    %641 = vmatpush1.msra.mxu0 0.0
    %642 = vmatprep.subr.mxu0 0.0
    %643 = vmatpush1.msra.mxu0 0.0
    %644 = vmatprep.subr.mxu0 0.0
    %645 = vmatpush1.msra.mxu0 0.0
    %646 = vmatprep.subr.mxu0 0.0
    %647 = vmatpush1.msra.mxu0 0.0
    %648 = vmatprep.mubr.f32.mxu0 0.0
    %649 = vmatmul.mubr.f32.gmra.mrb[0].mxu0 %v582
    %v650 = vpop.f32.mrb[0].mxu0
    %v651 = vadd.f32 0.0, %v650
    %v652 = vpop.f32.mrb[0].mxu0
    %653 = vdwg.mxu0
    %654 = vrot.lane.b32.xlu0 %v157, 104
    %v655 = vpop.permute.xlu0 %654
    %656 = vrot.lane.b32.xlu0 %v149, 72
    %v657 = vpop.permute.xlu0 %656
    %v658 = vsel %vm161, %v655, 0
    %v660 = vsel %vm161, %v657, 0
    %662 = vmatprep.subr.mxu0 0.0
    %663 = vmatpush1.xpose.msra.mxu0 %v660
    %664 = vmatprep.subr.mxu0 0.0
    %665 = vmatpush1.xpose.msra.mxu0 0.0
    %666 = vmatprep.subr.mxu0 0.0
    %667 = vmatpush1.xpose.msra.mxu0 0.0
    %668 = vmatprep.subr.mxu0 0.0
    %669 = vmatpush1.xpose.msra.mxu0 0.0
    %670 = vmatprep.subr.mxu0 0.0
    %671 = vmatpush1.xpose.msra.mxu0 0.0
    %672 = vmatprep.subr.mxu0 0.0
    %673 = vmatpush1.xpose.msra.mxu0 0.0
    %674 = vmatprep.subr.mxu0 0.0
    %675 = vmatpush1.xpose.msra.mxu0 0.0
    %676 = vmatprep.subr.mxu0 0.0
    %677 = vmatpush1.xpose.msra.mxu0 0.0
    %678 = vmatprep.subr.mxu0 0.0
    %679 = vmatpush1.xpose.msra.mxu0 0.0
    %680 = vmatprep.subr.mxu0 0.0
    %681 = vmatpush1.xpose.msra.mxu0 0.0
    %682 = vmatprep.subr.mxu0 0.0
    %683 = vmatpush1.xpose.msra.mxu0 0.0
    %684 = vmatprep.subr.mxu0 0.0
    %685 = vmatpush1.xpose.msra.mxu0 0.0
    %686 = vmatprep.subr.mxu0 0.0
    %687 = vmatpush1.xpose.msra.mxu0 0.0
    %688 = vmatprep.subr.mxu0 0.0
    %689 = vmatpush1.xpose.msra.mxu0 0.0
    %690 = vmatprep.subr.mxu0 0.0
    %691 = vmatpush1.xpose.msra.mxu0 0.0
    %692 = vmatprep.subr.mxu0 0.0
    %693 = vmatpush1.xpose.msra.mxu0 0.0
    %694 = vmatprep.subr.mxu0 0.0
    %695 = vmatpush1.xpose.msra.mxu0 0.0
    %696 = vmatprep.subr.mxu0 0.0
    %697 = vmatpush1.xpose.msra.mxu0 0.0
    %698 = vmatprep.subr.mxu0 0.0
    %699 = vmatpush1.xpose.msra.mxu0 0.0
    %700 = vmatprep.subr.mxu0 0.0
    %701 = vmatpush1.xpose.msra.mxu0 0.0
    %702 = vmatprep.subr.mxu0 0.0
    %703 = vmatpush1.xpose.msra.mxu0 0.0
    %704 = vmatprep.subr.mxu0 0.0
    %705 = vmatpush1.xpose.msra.mxu0 0.0
    %706 = vmatprep.subr.mxu0 0.0
    %707 = vmatpush1.xpose.msra.mxu0 0.0
    %708 = vmatprep.subr.mxu0 0.0
    %709 = vmatpush1.xpose.msra.mxu0 0.0
    %710 = vmatprep.subr.mxu0 0.0
    %711 = vmatpush1.xpose.msra.mxu0 0.0
    %712 = vmatprep.subr.mxu0 0.0
    %713 = vmatpush1.xpose.msra.mxu0 0.0
    %714 = vmatprep.subr.mxu0 0.0
    %715 = vmatpush1.xpose.msra.mxu0 0.0
    %716 = vmatprep.subr.mxu0 0.0
    %717 = vmatpush1.xpose.msra.mxu0 0.0
    %718 = vmatprep.subr.mxu0 0.0
    %719 = vmatpush1.xpose.msra.mxu0 0.0
    %720 = vmatprep.subr.mxu0 0.0
    %721 = vmatpush1.xpose.msra.mxu0 0.0
    %722 = vmatprep.subr.mxu0 0.0
    %723 = vmatpush1.xpose.msra.mxu0 0.0
    %724 = vmatprep.subr.mxu0 0.0
    %725 = vmatpush1.xpose.msra.mxu0 0.0
    %726 = vmatprep.mubr.f32.mxu0 0.0
    %727 = vmatmul.mubr.f32.gmra.mrb[0].mxu0 %v658
    %v728 = vpop.f32.mrb[0].mxu0
    %v729 = vadd.f32 0.0, %v728
    %v730 = vpop.f32.mrb[0].mxu0
    %731 = vdwg.mxu0
    %v732 = vsel %vm161, %v729, -inf
    %733 = vmax.xlane.f32.xlu0 %v732
    %v734 = vpop.xlane.xlu0 %733
    %v735 = vsub.f32 %v729, %v734
    %v736 = vmul.f32 %v735, 1.442695
    %v737 = vpow.pop %v736
    %v738 = vsel %vm161, %v737, 0.0
    %739 = vadd.xlane.f32.xlu0 %v738
    %v740 = vpop.xlane.xlu0 %739
    %v741 = vrcp.pop %v740
    %v742 = vmul.f32 %v737, %v741
    %743 = vrot.lane.b32.xlu0 %v149, 40
    %v744 = vpop.permute.xlu0 %743
    %v747 = vsel %vm161, %v742, 0
    %749 = vmatprep.subr.mxu0 0.0
    %750 = vmatpush1.msra.mxu0 %v744
    %751 = vmatprep.subr.mxu0 0.0
    %752 = vmatpush1.msra.mxu0 0.0
    %753 = vmatprep.subr.mxu0 0.0
    %754 = vmatpush1.msra.mxu0 0.0
    %755 = vmatprep.subr.mxu0 0.0
    %756 = vmatpush1.msra.mxu0 0.0
    %757 = vmatprep.subr.mxu0 0.0
    %758 = vmatpush1.msra.mxu0 0.0
    %759 = vmatprep.subr.mxu0 0.0
    %760 = vmatpush1.msra.mxu0 0.0
    %761 = vmatprep.subr.mxu0 0.0
    %762 = vmatpush1.msra.mxu0 0.0
    %763 = vmatprep.subr.mxu0 0.0
    %764 = vmatpush1.msra.mxu0 0.0
    %765 = vmatprep.subr.mxu0 0.0
    %766 = vmatpush1.msra.mxu0 0.0
    %767 = vmatprep.subr.mxu0 0.0
    %768 = vmatpush1.msra.mxu0 0.0
    %769 = vmatprep.subr.mxu0 0.0
    %770 = vmatpush1.msra.mxu0 0.0
    %771 = vmatprep.subr.mxu0 0.0
    %772 = vmatpush1.msra.mxu0 0.0
    %773 = vmatprep.subr.mxu0 0.0
    %774 = vmatpush1.msra.mxu0 0.0
    %775 = vmatprep.subr.mxu0 0.0
    %776 = vmatpush1.msra.mxu0 0.0
    %777 = vmatprep.subr.mxu0 0.0
    %778 = vmatpush1.msra.mxu0 0.0
    %779 = vmatprep.subr.mxu0 0.0
    %780 = vmatpush1.msra.mxu0 0.0
    %781 = vmatprep.subr.mxu0 0.0
    %782 = vmatpush1.msra.mxu0 0.0
    %783 = vmatprep.subr.mxu0 0.0
    %784 = vmatpush1.msra.mxu0 0.0
    %785 = vmatprep.subr.mxu0 0.0
    %786 = vmatpush1.msra.mxu0 0.0
    %787 = vmatprep.subr.mxu0 0.0
    %788 = vmatpush1.msra.mxu0 0.0
    %789 = vmatprep.subr.mxu0 0.0
    %790 = vmatpush1.msra.mxu0 0.0
    %791 = vmatprep.subr.mxu0 0.0
    %792 = vmatpush1.msra.mxu0 0.0
    %793 = vmatprep.subr.mxu0 0.0
    %794 = vmatpush1.msra.mxu0 0.0
    %795 = vmatprep.subr.mxu0 0.0
    %796 = vmatpush1.msra.mxu0 0.0
    %797 = vmatprep.subr.mxu0 0.0
    %798 = vmatpush1.msra.mxu0 0.0
    %799 = vmatprep.subr.mxu0 0.0
    %800 = vmatpush1.msra.mxu0 0.0
    %801 = vmatprep.subr.mxu0 0.0
    %802 = vmatpush1.msra.mxu0 0.0
    %803 = vmatprep.subr.mxu0 0.0
    %804 = vmatpush1.msra.mxu0 0.0
    %805 = vmatprep.subr.mxu0 0.0
    %806 = vmatpush1.msra.mxu0 0.0
    %807 = vmatprep.subr.mxu0 0.0
    %808 = vmatpush1.msra.mxu0 0.0
    %809 = vmatprep.subr.mxu0 0.0
    %810 = vmatpush1.msra.mxu0 0.0
    %811 = vmatprep.subr.mxu0 0.0
    %812 = vmatpush1.msra.mxu0 0.0
    %813 = vmatprep.mubr.f32.mxu0 0.0
    %814 = vmatmul.mubr.f32.gmra.mrb[0].mxu0 %v747
    %v815 = vpop.f32.mrb[0].mxu0
    %v816 = vadd.f32 0.0, %v815
    %v817 = vpop.f32.mrb[0].mxu0
    %818 = vdwg.mxu0
    %820 = vrot.lane.b32.xlu0 %v486, 8
    %v821 = vpop.permute.xlu0 %820
    %824 = vrot.lane.b32.xlu0 %v651, 16
    %v825 = vpop.permute.xlu0 %824
    %828 = vrot.lane.b32.xlu0 %v816, 24
    %v829 = vpop.permute.xlu0 %828
    %v831 = vsel %vm161, %v321, %v821
    %vm832 = vcmask 130048
    %v833 = vsel %vm832, %v831, %v825
    %vm834 = vcmask 195584
    %v835 = vsel %vm834, %v833, %v829
    %v836 = vmul.f32 %v154, 0.35355338
    %838 = vrot.lane.b32.xlu0 %v154, 96
    %v839 = vpop.permute.xlu0 %838
    %v841 = vsel %vm161, %v836, 0
    %v843 = vsel %vm161, %v839, 0
    %845 = vmatprep.subr.mxu0 0.0
    %846 = vmatpush1.xpose.msra.mxu0 %v843
    %847 = vmatprep.subr.mxu0 0.0
    %848 = vmatpush1.xpose.msra.mxu0 0.0
    %849 = vmatprep.subr.mxu0 0.0
    %850 = vmatpush1.xpose.msra.mxu0 0.0
    %851 = vmatprep.subr.mxu0 0.0
    %852 = vmatpush1.xpose.msra.mxu0 0.0
    %853 = vmatprep.subr.mxu0 0.0
    %854 = vmatpush1.xpose.msra.mxu0 0.0
    %855 = vmatprep.subr.mxu0 0.0
    %856 = vmatpush1.xpose.msra.mxu0 0.0
    %857 = vmatprep.subr.mxu0 0.0
    %858 = vmatpush1.xpose.msra.mxu0 0.0
    %859 = vmatprep.subr.mxu0 0.0
    %860 = vmatpush1.xpose.msra.mxu0 0.0
    %861 = vmatprep.subr.mxu0 0.0
    %862 = vmatpush1.xpose.msra.mxu0 0.0
    %863 = vmatprep.subr.mxu0 0.0
    %864 = vmatpush1.xpose.msra.mxu0 0.0
    %865 = vmatprep.subr.mxu0 0.0
    %866 = vmatpush1.xpose.msra.mxu0 0.0
    %867 = vmatprep.subr.mxu0 0.0
    %868 = vmatpush1.xpose.msra.mxu0 0.0
    %869 = vmatprep.subr.mxu0 0.0
    %870 = vmatpush1.xpose.msra.mxu0 0.0
    %871 = vmatprep.subr.mxu0 0.0
    %872 = vmatpush1.xpose.msra.mxu0 0.0
    %873 = vmatprep.subr.mxu0 0.0
    %874 = vmatpush1.xpose.msra.mxu0 0.0
    %875 = vmatprep.subr.mxu0 0.0
    %876 = vmatpush1.xpose.msra.mxu0 0.0
    %877 = vmatprep.subr.mxu0 0.0
    %878 = vmatpush1.xpose.msra.mxu0 0.0
    %879 = vmatprep.subr.mxu0 0.0
    %880 = vmatpush1.xpose.msra.mxu0 0.0
    %881 = vmatprep.subr.mxu0 0.0
    %882 = vmatpush1.xpose.msra.mxu0 0.0
    %883 = vmatprep.subr.mxu0 0.0
    %884 = vmatpush1.xpose.msra.mxu0 0.0
    %885 = vmatprep.subr.mxu0 0.0
    %886 = vmatpush1.xpose.msra.mxu0 0.0
    %887 = vmatprep.subr.mxu0 0.0
    %888 = vmatpush1.xpose.msra.mxu0 0.0
    %889 = vmatprep.subr.mxu0 0.0
    %890 = vmatpush1.xpose.msra.mxu0 0.0
    %891 = vmatprep.subr.mxu0 0.0
    %892 = vmatpush1.xpose.msra.mxu0 0.0
    %893 = vmatprep.subr.mxu0 0.0
    %894 = vmatpush1.xpose.msra.mxu0 0.0
    %895 = vmatprep.subr.mxu0 0.0
    %896 = vmatpush1.xpose.msra.mxu0 0.0
    %897 = vmatprep.subr.mxu0 0.0
    %898 = vmatpush1.xpose.msra.mxu0 0.0
    %899 = vmatprep.subr.mxu0 0.0
    %900 = vmatpush1.xpose.msra.mxu0 0.0
    %901 = vmatprep.subr.mxu0 0.0
    %902 = vmatpush1.xpose.msra.mxu0 0.0
    %903 = vmatprep.subr.mxu0 0.0
    %904 = vmatpush1.xpose.msra.mxu0 0.0
    %905 = vmatprep.subr.mxu0 0.0
    %906 = vmatpush1.xpose.msra.mxu0 0.0
    %907 = vmatprep.subr.mxu0 0.0
    %908 = vmatpush1.xpose.msra.mxu0 0.0
    %909 = vmatprep.mubr.f32.mxu0 0.0
    %910 = vmatmul.mubr.f32.gmra.mrb[0].mxu0 %v841
    %v911 = vpop.f32.mrb[0].mxu0
    %v912 = vadd.f32 0.0, %v911
    %v913 = vpop.f32.mrb[0].mxu0
    %914 = vdwg.mxu0
    %v915 = vsel %vm161, %v912, -inf
    %916 = vmax.xlane.f32.xlu0 %v915
    %v917 = vpop.xlane.xlu0 %916
    %v918 = vsub.f32 %v912, %v917
    %v919 = vmul.f32 %v918, 1.442695
    %v920 = vpow.pop %v919
    %v921 = vsel %vm161, %v920, 0.0
    %922 = vadd.xlane.f32.xlu0 %v921
    %v923 = vpop.xlane.xlu0 %922
    %v924 = vrcp.pop %v923
    %v925 = vmul.f32 %v920, %v924
    %926 = vrot.lane.b32.xlu0 %v154, 64
    %v927 = vpop.permute.xlu0 %926
    %v930 = vsel %vm161, %v925, 0
    %932 = vmatprep.subr.mxu0 0.0
    %933 = vmatpush1.msra.mxu0 %v927
    %934 = vmatprep.subr.mxu0 0.0
    %935 = vmatpush1.msra.mxu0 0.0
    %936 = vmatprep.subr.mxu0 0.0
    %937 = vmatpush1.msra.mxu0 0.0
    %938 = vmatprep.subr.mxu0 0.0
    %939 = vmatpush1.msra.mxu0 0.0
    %940 = vmatprep.subr.mxu0 0.0
    %941 = vmatpush1.msra.mxu0 0.0
    %942 = vmatprep.subr.mxu0 0.0
    %943 = vmatpush1.msra.mxu0 0.0
    %944 = vmatprep.subr.mxu0 0.0
    %945 = vmatpush1.msra.mxu0 0.0
    %946 = vmatprep.subr.mxu0 0.0
    %947 = vmatpush1.msra.mxu0 0.0
    %948 = vmatprep.subr.mxu0 0.0
    %949 = vmatpush1.msra.mxu0 0.0
    %950 = vmatprep.subr.mxu0 0.0
    %951 = vmatpush1.msra.mxu0 0.0
    %952 = vmatprep.subr.mxu0 0.0
    %953 = vmatpush1.msra.mxu0 0.0
    %954 = vmatprep.subr.mxu0 0.0
    %955 = vmatpush1.msra.mxu0 0.0
    %956 = vmatprep.subr.mxu0 0.0
    %957 = vmatpush1.msra.mxu0 0.0
    %958 = vmatprep.subr.mxu0 0.0
    %959 = vmatpush1.msra.mxu0 0.0
    %960 = vmatprep.subr.mxu0 0.0
    %961 = vmatpush1.msra.mxu0 0.0
    %962 = vmatprep.subr.mxu0 0.0
    %963 = vmatpush1.msra.mxu0 0.0
    %964 = vmatprep.subr.mxu0 0.0
    %965 = vmatpush1.msra.mxu0 0.0
    %966 = vmatprep.subr.mxu0 0.0
    %967 = vmatpush1.msra.mxu0 0.0
    %968 = vmatprep.subr.mxu0 0.0
    %969 = vmatpush1.msra.mxu0 0.0
    %970 = vmatprep.subr.mxu0 0.0
    %971 = vmatpush1.msra.mxu0 0.0
    %972 = vmatprep.subr.mxu0 0.0
    %973 = vmatpush1.msra.mxu0 0.0
    %974 = vmatprep.subr.mxu0 0.0
    %975 = vmatpush1.msra.mxu0 0.0
    %976 = vmatprep.subr.mxu0 0.0
    %977 = vmatpush1.msra.mxu0 0.0
    %978 = vmatprep.subr.mxu0 0.0
    %979 = vmatpush1.msra.mxu0 0.0
    %980 = vmatprep.subr.mxu0 0.0
    %981 = vmatpush1.msra.mxu0 0.0
    %982 = vmatprep.subr.mxu0 0.0
    %983 = vmatpush1.msra.mxu0 0.0
    %984 = vmatprep.subr.mxu0 0.0
    %985 = vmatpush1.msra.mxu0 0.0
    %986 = vmatprep.subr.mxu0 0.0
    %987 = vmatpush1.msra.mxu0 0.0
    %988 = vmatprep.subr.mxu0 0.0
    %989 = vmatpush1.msra.mxu0 0.0
    %990 = vmatprep.subr.mxu0 0.0
    %991 = vmatpush1.msra.mxu0 0.0
    %992 = vmatprep.subr.mxu0 0.0
    %993 = vmatpush1.msra.mxu0 0.0
    %994 = vmatprep.subr.mxu0 0.0
    %995 = vmatpush1.msra.mxu0 0.0
    %996 = vmatprep.mubr.f32.mxu0 0.0
    %997 = vmatmul.mubr.f32.gmra.mrb[0].mxu0 %v930
    %v998 = vpop.f32.mrb[0].mxu0
    %v999 = vadd.f32 0.0, %v998
    %v1000 = vpop.f32.mrb[0].mxu0
    %1001 = vdwg.mxu0
    %1002 = vrot.lane.b32.xlu0 %v836, 120
    %v1003 = vpop.permute.xlu0 %1002
    %1004 = vrot.lane.b32.xlu0 %v154, 88
    %v1005 = vpop.permute.xlu0 %1004
    %v1006 = vsel %vm161, %v1003, 0
    %v1008 = vsel %vm161, %v1005, 0
    %1010 = vmatprep.subr.mxu0 0.0
    %1011 = vmatpush1.xpose.msra.mxu0 %v1008
    %1012 = vmatprep.subr.mxu0 0.0
    %1013 = vmatpush1.xpose.msra.mxu0 0.0
    %1014 = vmatprep.subr.mxu0 0.0
    %1015 = vmatpush1.xpose.msra.mxu0 0.0
    %1016 = vmatprep.subr.mxu0 0.0
    %1017 = vmatpush1.xpose.msra.mxu0 0.0
    %1018 = vmatprep.subr.mxu0 0.0
    %1019 = vmatpush1.xpose.msra.mxu0 0.0
    %1020 = vmatprep.subr.mxu0 0.0
    %1021 = vmatpush1.xpose.msra.mxu0 0.0
    %1022 = vmatprep.subr.mxu0 0.0
    %1023 = vmatpush1.xpose.msra.mxu0 0.0
    %1024 = vmatprep.subr.mxu0 0.0
    %1025 = vmatpush1.xpose.msra.mxu0 0.0
    %1026 = vmatprep.subr.mxu0 0.0
    %1027 = vmatpush1.xpose.msra.mxu0 0.0
    %1028 = vmatprep.subr.mxu0 0.0
    %1029 = vmatpush1.xpose.msra.mxu0 0.0
    %1030 = vmatprep.subr.mxu0 0.0
    %1031 = vmatpush1.xpose.msra.mxu0 0.0
    %1032 = vmatprep.subr.mxu0 0.0
    %1033 = vmatpush1.xpose.msra.mxu0 0.0
    %1034 = vmatprep.subr.mxu0 0.0
    %1035 = vmatpush1.xpose.msra.mxu0 0.0
    %1036 = vmatprep.subr.mxu0 0.0
    %1037 = vmatpush1.xpose.msra.mxu0 0.0
    %1038 = vmatprep.subr.mxu0 0.0
    %1039 = vmatpush1.xpose.msra.mxu0 0.0
    %1040 = vmatprep.subr.mxu0 0.0
    %1041 = vmatpush1.xpose.msra.mxu0 0.0
    %1042 = vmatprep.subr.mxu0 0.0
    %1043 = vmatpush1.xpose.msra.mxu0 0.0
    %1044 = vmatprep.subr.mxu0 0.0
    %1045 = vmatpush1.xpose.msra.mxu0 0.0
    %1046 = vmatprep.subr.mxu0 0.0
    %1047 = vmatpush1.xpose.msra.mxu0 0.0
    %1048 = vmatprep.subr.mxu0 0.0
    %1049 = vmatpush1.xpose.msra.mxu0 0.0
    %1050 = vmatprep.subr.mxu0 0.0
    %1051 = vmatpush1.xpose.msra.mxu0 0.0
    %1052 = vmatprep.subr.mxu0 0.0
    %1053 = vmatpush1.xpose.msra.mxu0 0.0
    %1054 = vmatprep.subr.mxu0 0.0
    %1055 = vmatpush1.xpose.msra.mxu0 0.0
    %1056 = vmatprep.subr.mxu0 0.0
    %1057 = vmatpush1.xpose.msra.mxu0 0.0
    %1058 = vmatprep.subr.mxu0 0.0
    %1059 = vmatpush1.xpose.msra.mxu0 0.0
    %1060 = vmatprep.subr.mxu0 0.0
    %1061 = vmatpush1.xpose.msra.mxu0 0.0
    %1062 = vmatprep.subr.mxu0 0.0
    %1063 = vmatpush1.xpose.msra.mxu0 0.0
    %1064 = vmatprep.subr.mxu0 0.0
    %1065 = vmatpush1.xpose.msra.mxu0 0.0
    %1066 = vmatprep.subr.mxu0 0.0
    %1067 = vmatpush1.xpose.msra.mxu0 0.0
    %1068 = vmatprep.subr.mxu0 0.0
    %1069 = vmatpush1.xpose.msra.mxu0 0.0
    %1070 = vmatprep.subr.mxu0 0.0
    %1071 = vmatpush1.xpose.msra.mxu0 0.0
    %1072 = vmatprep.subr.mxu0 0.0
    %1073 = vmatpush1.xpose.msra.mxu0 0.0
    %1074 = vmatprep.mubr.f32.mxu0 0.0
    %1075 = vmatmul.mubr.f32.gmra.mrb[0].mxu0 %v1006
    %v1076 = vpop.f32.mrb[0].mxu0
    %v1077 = vadd.f32 0.0, %v1076
    %v1078 = vpop.f32.mrb[0].mxu0
    %1079 = vdwg.mxu0
    %v1080 = vsel %vm161, %v1077, -inf
    %1081 = vmax.xlane.f32.xlu0 %v1080
    %v1082 = vpop.xlane.xlu0 %1081
    %v1083 = vsub.f32 %v1077, %v1082
    %v1084 = vmul.f32 %v1083, 1.442695
    %v1085 = vpow.pop %v1084
    %v1086 = vsel %vm161, %v1085, 0.0
    %1087 = vadd.xlane.f32.xlu0 %v1086
    %v1088 = vpop.xlane.xlu0 %1087
    %v1089 = vrcp.pop %v1088
    %v1090 = vmul.f32 %v1085, %v1089
    %1091 = vrot.lane.b32.xlu0 %v154, 56
    %v1092 = vpop.permute.xlu0 %1091
    %v1095 = vsel %vm161, %v1090, 0
    %1097 = vmatprep.subr.mxu0 0.0
    %1098 = vmatpush1.msra.mxu0 %v1092
    %1099 = vmatprep.subr.mxu0 0.0
    %1100 = vmatpush1.msra.mxu0 0.0
    %1101 = vmatprep.subr.mxu0 0.0
    %1102 = vmatpush1.msra.mxu0 0.0
    %1103 = vmatprep.subr.mxu0 0.0
    %1104 = vmatpush1.msra.mxu0 0.0
    %1105 = vmatprep.subr.mxu0 0.0
    %1106 = vmatpush1.msra.mxu0 0.0
    %1107 = vmatprep.subr.mxu0 0.0
    %1108 = vmatpush1.msra.mxu0 0.0
    %1109 = vmatprep.subr.mxu0 0.0
    %1110 = vmatpush1.msra.mxu0 0.0
    %1111 = vmatprep.subr.mxu0 0.0
    %1112 = vmatpush1.msra.mxu0 0.0
    %1113 = vmatprep.subr.mxu0 0.0
    %1114 = vmatpush1.msra.mxu0 0.0
    %1115 = vmatprep.subr.mxu0 0.0
    %1116 = vmatpush1.msra.mxu0 0.0
    %1117 = vmatprep.subr.mxu0 0.0
    %1118 = vmatpush1.msra.mxu0 0.0
    %1119 = vmatprep.subr.mxu0 0.0
    %1120 = vmatpush1.msra.mxu0 0.0
    %1121 = vmatprep.subr.mxu0 0.0
    %1122 = vmatpush1.msra.mxu0 0.0
    %1123 = vmatprep.subr.mxu0 0.0
    %1124 = vmatpush1.msra.mxu0 0.0
    %1125 = vmatprep.subr.mxu0 0.0
    %1126 = vmatpush1.msra.mxu0 0.0
    %1127 = vmatprep.subr.mxu0 0.0
    %1128 = vmatpush1.msra.mxu0 0.0
    %1129 = vmatprep.subr.mxu0 0.0
    %1130 = vmatpush1.msra.mxu0 0.0
    %1131 = vmatprep.subr.mxu0 0.0
    %1132 = vmatpush1.msra.mxu0 0.0
    %1133 = vmatprep.subr.mxu0 0.0
    %1134 = vmatpush1.msra.mxu0 0.0
    %1135 = vmatprep.subr.mxu0 0.0
    %1136 = vmatpush1.msra.mxu0 0.0
    %1137 = vmatprep.subr.mxu0 0.0
    %1138 = vmatpush1.msra.mxu0 0.0
    %1139 = vmatprep.subr.mxu0 0.0
    %1140 = vmatpush1.msra.mxu0 0.0
    %1141 = vmatprep.subr.mxu0 0.0
    %1142 = vmatpush1.msra.mxu0 0.0
    %1143 = vmatprep.subr.mxu0 0.0
    %1144 = vmatpush1.msra.mxu0 0.0
    %1145 = vmatprep.subr.mxu0 0.0
    %1146 = vmatpush1.msra.mxu0 0.0
    %1147 = vmatprep.subr.mxu0 0.0
    %1148 = vmatpush1.msra.mxu0 0.0
    %1149 = vmatprep.subr.mxu0 0.0
    %1150 = vmatpush1.msra.mxu0 0.0
    %1151 = vmatprep.subr.mxu0 0.0
    %1152 = vmatpush1.msra.mxu0 0.0
    %1153 = vmatprep.subr.mxu0 0.0
    %1154 = vmatpush1.msra.mxu0 0.0
    %1155 = vmatprep.subr.mxu0 0.0
    %1156 = vmatpush1.msra.mxu0 0.0
    %1157 = vmatprep.subr.mxu0 0.0
    %1158 = vmatpush1.msra.mxu0 0.0
    %1159 = vmatprep.subr.mxu0 0.0
    %1160 = vmatpush1.msra.mxu0 0.0
    %1161 = vmatprep.mubr.f32.mxu0 0.0
    %1162 = vmatmul.mubr.f32.gmra.mrb[0].mxu0 %v1095
    %v1163 = vpop.f32.mrb[0].mxu0
    %v1164 = vadd.f32 0.0, %v1163
    %v1165 = vpop.f32.mrb[0].mxu0
    %1166 = vdwg.mxu0
    %1167 = vrot.lane.b32.xlu0 %v836, 112
    %v1168 = vpop.permute.xlu0 %1167
    %1169 = vrot.lane.b32.xlu0 %v154, 80
    %v1170 = vpop.permute.xlu0 %1169
    %v1171 = vsel %vm161, %v1168, 0
    %v1173 = vsel %vm161, %v1170, 0
    %1175 = vmatprep.subr.mxu0 0.0
    %1176 = vmatpush1.xpose.msra.mxu0 %v1173
    %1177 = vmatprep.subr.mxu0 0.0
    %1178 = vmatpush1.xpose.msra.mxu0 0.0
    %1179 = vmatprep.subr.mxu0 0.0
    %1180 = vmatpush1.xpose.msra.mxu0 0.0
    %1181 = vmatprep.subr.mxu0 0.0
    %1182 = vmatpush1.xpose.msra.mxu0 0.0
    %1183 = vmatprep.subr.mxu0 0.0
    %1184 = vmatpush1.xpose.msra.mxu0 0.0
    %1185 = vmatprep.subr.mxu0 0.0
    %1186 = vmatpush1.xpose.msra.mxu0 0.0
    %1187 = vmatprep.subr.mxu0 0.0
    %1188 = vmatpush1.xpose.msra.mxu0 0.0
    %1189 = vmatprep.subr.mxu0 0.0
    %1190 = vmatpush1.xpose.msra.mxu0 0.0
    %1191 = vmatprep.subr.mxu0 0.0
    %1192 = vmatpush1.xpose.msra.mxu0 0.0
    %1193 = vmatprep.subr.mxu0 0.0
    %1194 = vmatpush1.xpose.msra.mxu0 0.0
    %1195 = vmatprep.subr.mxu0 0.0
    %1196 = vmatpush1.xpose.msra.mxu0 0.0
    %1197 = vmatprep.subr.mxu0 0.0
    %1198 = vmatpush1.xpose.msra.mxu0 0.0
    %1199 = vmatprep.subr.mxu0 0.0
    %1200 = vmatpush1.xpose.msra.mxu0 0.0
    %1201 = vmatprep.subr.mxu0 0.0
    %1202 = vmatpush1.xpose.msra.mxu0 0.0
    %1203 = vmatprep.subr.mxu0 0.0
    %1204 = vmatpush1.xpose.msra.mxu0 0.0
    %1205 = vmatprep.subr.mxu0 0.0
    %1206 = vmatpush1.xpose.msra.mxu0 0.0
    %1207 = vmatprep.subr.mxu0 0.0
    %1208 = vmatpush1.xpose.msra.mxu0 0.0
    %1209 = vmatprep.subr.mxu0 0.0
    %1210 = vmatpush1.xpose.msra.mxu0 0.0
    %1211 = vmatprep.subr.mxu0 0.0
    %1212 = vmatpush1.xpose.msra.mxu0 0.0
    %1213 = vmatprep.subr.mxu0 0.0
    %1214 = vmatpush1.xpose.msra.mxu0 0.0
    %1215 = vmatprep.subr.mxu0 0.0
    %1216 = vmatpush1.xpose.msra.mxu0 0.0
    %1217 = vmatprep.subr.mxu0 0.0
    %1218 = vmatpush1.xpose.msra.mxu0 0.0
    %1219 = vmatprep.subr.mxu0 0.0
    %1220 = vmatpush1.xpose.msra.mxu0 0.0
    %1221 = vmatprep.subr.mxu0 0.0
    %1222 = vmatpush1.xpose.msra.mxu0 0.0
    %1223 = vmatprep.subr.mxu0 0.0
    %1224 = vmatpush1.xpose.msra.mxu0 0.0
    %1225 = vmatprep.subr.mxu0 0.0
    %1226 = vmatpush1.xpose.msra.mxu0 0.0
    %1227 = vmatprep.subr.mxu0 0.0
    %1228 = vmatpush1.xpose.msra.mxu0 0.0
    %1229 = vmatprep.subr.mxu0 0.0
    %1230 = vmatpush1.xpose.msra.mxu0 0.0
    %1231 = vmatprep.subr.mxu0 0.0
    %1232 = vmatpush1.xpose.msra.mxu0 0.0
    %1233 = vmatprep.subr.mxu0 0.0
    %1234 = vmatpush1.xpose.msra.mxu0 0.0
    %1235 = vmatprep.subr.mxu0 0.0
    %1236 = vmatpush1.xpose.msra.mxu0 0.0
    %1237 = vmatprep.subr.mxu0 0.0
    %1238 = vmatpush1.xpose.msra.mxu0 0.0
    %1239 = vmatprep.mubr.f32.mxu0 0.0
    %1240 = vmatmul.mubr.f32.gmra.mrb[0].mxu0 %v1171
    %v1241 = vpop.f32.mrb[0].mxu0
    %v1242 = vadd.f32 0.0, %v1241
    %v1243 = vpop.f32.mrb[0].mxu0
    %1244 = vdwg.mxu0
    %v1245 = vsel %vm161, %v1242, -inf
    %1246 = vmax.xlane.f32.xlu0 %v1245
    %v1247 = vpop.xlane.xlu0 %1246
    %v1248 = vsub.f32 %v1242, %v1247
    %v1249 = vmul.f32 %v1248, 1.442695
    %v1250 = vpow.pop %v1249
    %v1251 = vsel %vm161, %v1250, 0.0
    %1252 = vadd.xlane.f32.xlu0 %v1251
    %v1253 = vpop.xlane.xlu0 %1252
    %v1254 = vrcp.pop %v1253
    %v1255 = vmul.f32 %v1250, %v1254
    %1256 = vrot.lane.b32.xlu0 %v154, 48
    %v1257 = vpop.permute.xlu0 %1256
    %v1260 = vsel %vm161, %v1255, 0
    %1262 = vmatprep.subr.mxu0 0.0
    %1263 = vmatpush1.msra.mxu0 %v1257
    %1264 = vmatprep.subr.mxu0 0.0
    %1265 = vmatpush1.msra.mxu0 0.0
    %1266 = vmatprep.subr.mxu0 0.0
    %1267 = vmatpush1.msra.mxu0 0.0
    %1268 = vmatprep.subr.mxu0 0.0
    %1269 = vmatpush1.msra.mxu0 0.0
    %1270 = vmatprep.subr.mxu0 0.0
    %1271 = vmatpush1.msra.mxu0 0.0
    %1272 = vmatprep.subr.mxu0 0.0
    %1273 = vmatpush1.msra.mxu0 0.0
    %1274 = vmatprep.subr.mxu0 0.0
    %1275 = vmatpush1.msra.mxu0 0.0
    %1276 = vmatprep.subr.mxu0 0.0
    %1277 = vmatpush1.msra.mxu0 0.0
    %1278 = vmatprep.subr.mxu0 0.0
    %1279 = vmatpush1.msra.mxu0 0.0
    %1280 = vmatprep.subr.mxu0 0.0
    %1281 = vmatpush1.msra.mxu0 0.0
    %1282 = vmatprep.subr.mxu0 0.0
    %1283 = vmatpush1.msra.mxu0 0.0
    %1284 = vmatprep.subr.mxu0 0.0
    %1285 = vmatpush1.msra.mxu0 0.0
    %1286 = vmatprep.subr.mxu0 0.0
    %1287 = vmatpush1.msra.mxu0 0.0
    %1288 = vmatprep.subr.mxu0 0.0
    %1289 = vmatpush1.msra.mxu0 0.0
    %1290 = vmatprep.subr.mxu0 0.0
    %1291 = vmatpush1.msra.mxu0 0.0
    %1292 = vmatprep.subr.mxu0 0.0
    %1293 = vmatpush1.msra.mxu0 0.0
    %1294 = vmatprep.subr.mxu0 0.0
    %1295 = vmatpush1.msra.mxu0 0.0
    %1296 = vmatprep.subr.mxu0 0.0
    %1297 = vmatpush1.msra.mxu0 0.0
    %1298 = vmatprep.subr.mxu0 0.0
    %1299 = vmatpush1.msra.mxu0 0.0
    %1300 = vmatprep.subr.mxu0 0.0
    %1301 = vmatpush1.msra.mxu0 0.0
    %1302 = vmatprep.subr.mxu0 0.0
    %1303 = vmatpush1.msra.mxu0 0.0
    %1304 = vmatprep.subr.mxu0 0.0
    %1305 = vmatpush1.msra.mxu0 0.0
    %1306 = vmatprep.subr.mxu0 0.0
    %1307 = vmatpush1.msra.mxu0 0.0
    %1308 = vmatprep.subr.mxu0 0.0
    %1309 = vmatpush1.msra.mxu0 0.0
    %1310 = vmatprep.subr.mxu0 0.0
    %1311 = vmatpush1.msra.mxu0 0.0
    %1312 = vmatprep.subr.mxu0 0.0
    %1313 = vmatpush1.msra.mxu0 0.0
    %1314 = vmatprep.subr.mxu0 0.0
    %1315 = vmatpush1.msra.mxu0 0.0
    %1316 = vmatprep.subr.mxu0 0.0
    %1317 = vmatpush1.msra.mxu0 0.0
    %1318 = vmatprep.subr.mxu0 0.0
    %1319 = vmatpush1.msra.mxu0 0.0
    %1320 = vmatprep.subr.mxu0 0.0
    %1321 = vmatpush1.msra.mxu0 0.0
    %1322 = vmatprep.subr.mxu0 0.0
    %1323 = vmatpush1.msra.mxu0 0.0
    %1324 = vmatprep.subr.mxu0 0.0
    %1325 = vmatpush1.msra.mxu0 0.0
    %1326 = vmatprep.mubr.f32.mxu0 0.0
    %1327 = vmatmul.mubr.f32.gmra.mrb[0].mxu0 %v1260
    %v1328 = vpop.f32.mrb[0].mxu0
    %v1329 = vadd.f32 0.0, %v1328
    %v1330 = vpop.f32.mrb[0].mxu0
    %1331 = vdwg.mxu0
    %1332 = vrot.lane.b32.xlu0 %v836, 104
    %v1333 = vpop.permute.xlu0 %1332
    %1334 = vrot.lane.b32.xlu0 %v154, 72
    %v1335 = vpop.permute.xlu0 %1334
    %v1336 = vsel %vm161, %v1333, 0
    %v1338 = vsel %vm161, %v1335, 0
    %1340 = vmatprep.subr.mxu0 0.0
    %1341 = vmatpush1.xpose.msra.mxu0 %v1338
    %1342 = vmatprep.subr.mxu0 0.0
    %1343 = vmatpush1.xpose.msra.mxu0 0.0
    %1344 = vmatprep.subr.mxu0 0.0
    %1345 = vmatpush1.xpose.msra.mxu0 0.0
    %1346 = vmatprep.subr.mxu0 0.0
    %1347 = vmatpush1.xpose.msra.mxu0 0.0
    %1348 = vmatprep.subr.mxu0 0.0
    %1349 = vmatpush1.xpose.msra.mxu0 0.0
    %1350 = vmatprep.subr.mxu0 0.0
    %1351 = vmatpush1.xpose.msra.mxu0 0.0
    %1352 = vmatprep.subr.mxu0 0.0
    %1353 = vmatpush1.xpose.msra.mxu0 0.0
    %1354 = vmatprep.subr.mxu0 0.0
    %1355 = vmatpush1.xpose.msra.mxu0 0.0
    %1356 = vmatprep.subr.mxu0 0.0
    %1357 = vmatpush1.xpose.msra.mxu0 0.0
    %1358 = vmatprep.subr.mxu0 0.0
    %1359 = vmatpush1.xpose.msra.mxu0 0.0
    %1360 = vmatprep.subr.mxu0 0.0
    %1361 = vmatpush1.xpose.msra.mxu0 0.0
    %1362 = vmatprep.subr.mxu0 0.0
    %1363 = vmatpush1.xpose.msra.mxu0 0.0
    %1364 = vmatprep.subr.mxu0 0.0
    %1365 = vmatpush1.xpose.msra.mxu0 0.0
    %1366 = vmatprep.subr.mxu0 0.0
    %1367 = vmatpush1.xpose.msra.mxu0 0.0
    %1368 = vmatprep.subr.mxu0 0.0
    %1369 = vmatpush1.xpose.msra.mxu0 0.0
    %1370 = vmatprep.subr.mxu0 0.0
    %1371 = vmatpush1.xpose.msra.mxu0 0.0
    %1372 = vmatprep.subr.mxu0 0.0
    %1373 = vmatpush1.xpose.msra.mxu0 0.0
    %1374 = vmatprep.subr.mxu0 0.0
    %1375 = vmatpush1.xpose.msra.mxu0 0.0
    %1376 = vmatprep.subr.mxu0 0.0
    %1377 = vmatpush1.xpose.msra.mxu0 0.0
    %1378 = vmatprep.subr.mxu0 0.0
    %1379 = vmatpush1.xpose.msra.mxu0 0.0
    %1380 = vmatprep.subr.mxu0 0.0
    %1381 = vmatpush1.xpose.msra.mxu0 0.0
    %1382 = vmatprep.subr.mxu0 0.0
    %1383 = vmatpush1.xpose.msra.mxu0 0.0
    %1384 = vmatprep.subr.mxu0 0.0
    %1385 = vmatpush1.xpose.msra.mxu0 0.0
    %1386 = vmatprep.subr.mxu0 0.0
    %1387 = vmatpush1.xpose.msra.mxu0 0.0
    %1388 = vmatprep.subr.mxu0 0.0
    %1389 = vmatpush1.xpose.msra.mxu0 0.0
    %1390 = vmatprep.subr.mxu0 0.0
    %1391 = vmatpush1.xpose.msra.mxu0 0.0
    %1392 = vmatprep.subr.mxu0 0.0
    %1393 = vmatpush1.xpose.msra.mxu0 0.0
    %1394 = vmatprep.subr.mxu0 0.0
    %1395 = vmatpush1.xpose.msra.mxu0 0.0
    %1396 = vmatprep.subr.mxu0 0.0
    %1397 = vmatpush1.xpose.msra.mxu0 0.0
    %1398 = vmatprep.subr.mxu0 0.0
    %1399 = vmatpush1.xpose.msra.mxu0 0.0
    %1400 = vmatprep.subr.mxu0 0.0
    %1401 = vmatpush1.xpose.msra.mxu0 0.0
    %1402 = vmatprep.subr.mxu0 0.0
    %1403 = vmatpush1.xpose.msra.mxu0 0.0
    %1404 = vmatprep.mubr.f32.mxu0 0.0
    %1405 = vmatmul.mubr.f32.gmra.mrb[0].mxu0 %v1336
    %v1406 = vpop.f32.mrb[0].mxu0
    %v1407 = vadd.f32 0.0, %v1406
    %v1408 = vpop.f32.mrb[0].mxu0
    %1409 = vdwg.mxu0
    %v1410 = vsel %vm161, %v1407, -inf
    %1411 = vmax.xlane.f32.xlu0 %v1410
    %v1412 = vpop.xlane.xlu0 %1411
    %v1413 = vsub.f32 %v1407, %v1412
    %v1414 = vmul.f32 %v1413, 1.442695
    %v1415 = vpow.pop %v1414
    %v1416 = vsel %vm161, %v1415, 0.0
    %1417 = vadd.xlane.f32.xlu0 %v1416
    %v1418 = vpop.xlane.xlu0 %1417
    %v1419 = vrcp.pop %v1418
    %v1420 = vmul.f32 %v1415, %v1419
    %1421 = vrot.lane.b32.xlu0 %v154, 40
    %v1422 = vpop.permute.xlu0 %1421
    %v1425 = vsel %vm161, %v1420, 0
    %1427 = vmatprep.subr.mxu0 0.0
    %1428 = vmatpush1.msra.mxu0 %v1422
    %1429 = vmatprep.subr.mxu0 0.0
    %1430 = vmatpush1.msra.mxu0 0.0
    %1431 = vmatprep.subr.mxu0 0.0
    %1432 = vmatpush1.msra.mxu0 0.0
    %1433 = vmatprep.subr.mxu0 0.0
    %1434 = vmatpush1.msra.mxu0 0.0
    %1435 = vmatprep.subr.mxu0 0.0
    %1436 = vmatpush1.msra.mxu0 0.0
    %1437 = vmatprep.subr.mxu0 0.0
    %1438 = vmatpush1.msra.mxu0 0.0
    %1439 = vmatprep.subr.mxu0 0.0
    %1440 = vmatpush1.msra.mxu0 0.0
    %1441 = vmatprep.subr.mxu0 0.0
    %1442 = vmatpush1.msra.mxu0 0.0
    %1443 = vmatprep.subr.mxu0 0.0
    %1444 = vmatpush1.msra.mxu0 0.0
    %1445 = vmatprep.subr.mxu0 0.0
    %1446 = vmatpush1.msra.mxu0 0.0
    %1447 = vmatprep.subr.mxu0 0.0
    %1448 = vmatpush1.msra.mxu0 0.0
    %1449 = vmatprep.subr.mxu0 0.0
    %1450 = vmatpush1.msra.mxu0 0.0
    %1451 = vmatprep.subr.mxu0 0.0
    %1452 = vmatpush1.msra.mxu0 0.0
    %1453 = vmatprep.subr.mxu0 0.0
    %1454 = vmatpush1.msra.mxu0 0.0
    %1455 = vmatprep.subr.mxu0 0.0
    %1456 = vmatpush1.msra.mxu0 0.0
    %1457 = vmatprep.subr.mxu0 0.0
    %1458 = vmatpush1.msra.mxu0 0.0
    %1459 = vmatprep.subr.mxu0 0.0
    %1460 = vmatpush1.msra.mxu0 0.0
    %1461 = vmatprep.subr.mxu0 0.0
    %1462 = vmatpush1.msra.mxu0 0.0
    %1463 = vmatprep.subr.mxu0 0.0
    %1464 = vmatpush1.msra.mxu0 0.0
    %1465 = vmatprep.subr.mxu0 0.0
    %1466 = vmatpush1.msra.mxu0 0.0
    %1467 = vmatprep.subr.mxu0 0.0
    %1468 = vmatpush1.msra.mxu0 0.0
    %1469 = vmatprep.subr.mxu0 0.0
    %1470 = vmatpush1.msra.mxu0 0.0
    %1471 = vmatprep.subr.mxu0 0.0
    %1472 = vmatpush1.msra.mxu0 0.0
    %1473 = vmatprep.subr.mxu0 0.0
    %1474 = vmatpush1.msra.mxu0 0.0
    %1475 = vmatprep.subr.mxu0 0.0
    %1476 = vmatpush1.msra.mxu0 0.0
    %1477 = vmatprep.subr.mxu0 0.0
    %1478 = vmatpush1.msra.mxu0 0.0
    %1479 = vmatprep.subr.mxu0 0.0
    %1480 = vmatpush1.msra.mxu0 0.0
    %1481 = vmatprep.subr.mxu0 0.0
    %1482 = vmatpush1.msra.mxu0 0.0
    %1483 = vmatprep.subr.mxu0 0.0
    %1484 = vmatpush1.msra.mxu0 0.0
    %1485 = vmatprep.subr.mxu0 0.0
    %1486 = vmatpush1.msra.mxu0 0.0
    %1487 = vmatprep.subr.mxu0 0.0
    %1488 = vmatpush1.msra.mxu0 0.0
    %1489 = vmatprep.subr.mxu0 0.0
    %1490 = vmatpush1.msra.mxu0 0.0
    %1491 = vmatprep.mubr.f32.mxu0 0.0
    %1492 = vmatmul.mubr.f32.gmra.mrb[0].mxu0 %v1425
    %v1493 = vpop.f32.mrb[0].mxu0
    %v1494 = vadd.f32 0.0, %v1493
    %v1495 = vpop.f32.mrb[0].mxu0
    %1496 = vdwg.mxu0
    %1498 = vrot.lane.b32.xlu0 %v1164, 8
    %v1499 = vpop.permute.xlu0 %1498
    %1502 = vrot.lane.b32.xlu0 %v1329, 16
    %v1503 = vpop.permute.xlu0 %1502
    %1506 = vrot.lane.b32.xlu0 %v1494, 24
    %v1507 = vpop.permute.xlu0 %1506
    %v1509 = vsel %vm161, %v999, %v1499
    %v1510 = vsel %vm832, %v1509, %v1503
    %v1511 = vsel %vm834, %v1510, %v1507
    %v1512 = vld [vmem:[#allocation7] sm:$0xff]
    %v1513 = vld [vmem:[#allocation7 + $0x8] sm:$0xff]
    %v1514 = vld [vmem:[#allocation7 + $0x10] sm:$0xff]
    %v1515 = vld [vmem:[#allocation7 + $0x18] sm:$0xff]
    %v1516 = vld [vmem:[%s4] sm:$0x1]
    %v1518 = vlaneseq
    %v1519 = vshrl.u32 %v1518, 7
    %v1520 = vsub.s32 0, %v1519
    %v1521 = vrot.slane %v1516, %v1520
    %v1524 = vsel %vm75, %v835, 0
    %v1527 = vsel %vm75, %v1511, 0
    %1529 = vmatprep.subr.mxu0 0.0
    %1530 = vmatpush1.msra.mxu0 %v1512
    %1531 = vmatprep.subr.mxu0 0.0
    %1532 = vmatpush1.msra.mxu0 %v1513
    %1533 = vmatprep.subr.mxu0 0.0
    %1534 = vmatpush1.msra.mxu0 %v1514
    %1535 = vmatprep.subr.mxu0 0.0
    %1536 = vmatpush1.msra.mxu0 %v1515
    %1537 = vmatprep.subr.mxu0 0.0
    %1538 = vmatpush1.msra.mxu0 0.0
    %1539 = vmatprep.subr.mxu0 0.0
    %1540 = vmatpush1.msra.mxu0 0.0
    %1541 = vmatprep.subr.mxu0 0.0
    %1542 = vmatpush1.msra.mxu0 0.0
    %1543 = vmatprep.subr.mxu0 0.0
    %1544 = vmatpush1.msra.mxu0 0.0
    %1545 = vmatprep.subr.mxu0 0.0
    %1546 = vmatpush1.msra.mxu0 0.0
    %1547 = vmatprep.subr.mxu0 0.0
    %1548 = vmatpush1.msra.mxu0 0.0
    %1549 = vmatprep.subr.mxu0 0.0
    %1550 = vmatpush1.msra.mxu0 0.0
    %1551 = vmatprep.subr.mxu0 0.0
    %1552 = vmatpush1.msra.mxu0 0.0
    %1553 = vmatprep.subr.mxu0 0.0
    %1554 = vmatpush1.msra.mxu0 0.0
    %1555 = vmatprep.subr.mxu0 0.0
    %1556 = vmatpush1.msra.mxu0 0.0
    %1557 = vmatprep.subr.mxu0 0.0
    %1558 = vmatpush1.msra.mxu0 0.0
    %1559 = vmatprep.subr.mxu0 0.0
    %1560 = vmatpush1.msra.mxu0 0.0
    %1561 = vmatprep.subr.mxu0 0.0
    %1562 = vmatpush1.msra.mxu0 0.0
    %1563 = vmatprep.subr.mxu0 0.0
    %1564 = vmatpush1.msra.mxu0 0.0
    %1565 = vmatprep.subr.mxu0 0.0
    %1566 = vmatpush1.msra.mxu0 0.0
    %1567 = vmatprep.subr.mxu0 0.0
    %1568 = vmatpush1.msra.mxu0 0.0
    %1569 = vmatprep.subr.mxu0 0.0
    %1570 = vmatpush1.msra.mxu0 0.0
    %1571 = vmatprep.subr.mxu0 0.0
    %1572 = vmatpush1.msra.mxu0 0.0
    %1573 = vmatprep.subr.mxu0 0.0
    %1574 = vmatpush1.msra.mxu0 0.0
    %1575 = vmatprep.subr.mxu0 0.0
    %1576 = vmatpush1.msra.mxu0 0.0
    %1577 = vmatprep.subr.mxu0 0.0
    %1578 = vmatpush1.msra.mxu0 0.0
    %1579 = vmatprep.subr.mxu0 0.0
    %1580 = vmatpush1.msra.mxu0 0.0
    %1581 = vmatprep.subr.mxu0 0.0
    %1582 = vmatpush1.msra.mxu0 0.0
    %1583 = vmatprep.subr.mxu0 0.0
    %1584 = vmatpush1.msra.mxu0 0.0
    %1585 = vmatprep.subr.mxu0 0.0
    %1586 = vmatpush1.msra.mxu0 0.0
    %1587 = vmatprep.subr.mxu0 0.0
    %1588 = vmatpush1.msra.mxu0 0.0
    %1589 = vmatprep.subr.mxu0 0.0
    %1590 = vmatpush1.msra.mxu0 0.0
    %1591 = vmatprep.subr.mxu0 0.0
    %1592 = vmatpush1.msra.mxu0 0.0
    %1593 = vmatprep.mubr.f32.mxu0 0.0
    %1594 = vmatmul.mubr.f32.gmra.mrb[0].mxu0 %v1524
    %v1595 = vpop.f32.mrb[0].mxu0
    %v1596 = vadd.f32 %v1521, %v1595
    %v1597 = vpop.f32.mrb[0].mxu0
    %1598 = vmatprep.mubr.f32.mxu0 0.0
    %1599 = vmatmul.mubr.f32.gmra.mrb[0].mxu0 %v1527
    %v1600 = vpop.f32.mrb[0].mxu0
    %v1601 = vadd.f32 %v1521, %v1600
    %v1602 = vpop.f32.mrb[0].mxu0
    %1603 = vdwg.mxu0
    %1604 = vst.msk [vmem:[#allocation8] sm:$0xff] %vm75, %v1596
    %1605 = vst.msk [vmem:[#allocation8 + $0x8] sm:$0xff] %vm75, %v1601
    // Predicated region
    $region34: #{tpu_custom_call.1} parent=1 // pred_check
      _
    $region35: #{tpu_custom_call.1} parent=1 // pred_check_branch
      %1607 = sbr.rel (0) target = $region37
    $region36: #{tpu_custom_call.1} parent=1 // pred_region
      %s1609 = ssub.s32 256, 256
      %1610 = vsyncadd [#allocation4], %s1609
      %s1611 = sshll.u32 [#allocation8], 4
      %s1612 = int_to_ptr.vmem [resolvable:$true] %s1611
      %1617 = dma.vmem_to_hbm [thread:$0]  %s1612, 256, %s5, [#allocation4], 128, 128, 8
    $region37: #{tpu_custom_call.1} parent=1 // pred_fallthru
      _
    // Predicated region
    $region38: #{tpu_custom_call.1} parent=1 // pred_check
      _
    $region39: #{tpu_custom_call.1} parent=1 // pred_check_branch
      %1619 = sbr.rel (0) target = $region41
    $region40: #{tpu_custom_call.1} parent=1 // pred_region
      %1620 = dma.done [#allocation4], 256
    $region41: #{tpu_custom_call.1} parent=1 // pred_fallthru
      _
    %1621 = vsyncpa [#allocation3], 1
    %1622 = vsyncpa [#allocation6], 1
    %1623 = vsyncpa [#allocation4], 1

</llo_original>
